<compile_context>
chip_gen: v5e
topology: v5e:2x2
jax: 0.10.0
libtpu: 0.0.40
codegen_flags: <defaults>
</compile_context>

<pallas_src>
import functools

import jax
import jax.numpy as jnp
from jax import lax
from jax.experimental import pallas as pl
from jax.experimental.pallas import tpu as pltpu

FINFO_MIN = float(jnp.finfo(jnp.float32).min)


# ----------------------------------------------------------------------------
# Hardware introspection / capability probes.
# ----------------------------------------------------------------------------
@functools.lru_cache(maxsize=None)
def _vmem_limit_bytes():
    cap = 64 * 1024 * 1024                       # conservative fallback (v7x: 64 MiB/TC)
    try:
        cap = int(pltpu.get_tpu_info().vmem_capacity_bytes)
    except Exception:
        pass
    # ~100 MiB on 128 MiB parts (v5e/v6e), ~50 MiB on 64 MiB parts (v7x).
    return min(100 * 1024 * 1024, int(cap * 0.78))


@functools.lru_cache(maxsize=None)
def _is_v7x():
    try:
        return "v7" in jax.devices()[0].device_kind.lower()
    except Exception:
        return False


@functools.lru_cache(maxsize=None)
def _int8_dot_ok(m, k, n, transpose_rhs):
    """True iff an int8 x int8 -> int32 MXU matmul of this exact form/shape lowers,
    runs and is bit-exact on this chip.  v7x has no integer MXU -> False."""
    if _is_v7x():
        return False
    try:
        ka, kb = jax.random.split(jax.random.PRNGKey(7))
        a = jax.random.randint(ka, (m, k), -127, 128, jnp.int32).astype(jnp.int8)
        b_shape = (n, k) if transpose_rhs else (k, n)
        b = jax.random.randint(kb, b_shape, -127, 128, jnp.int32).astype(jnp.int8)

        def kern(a_ref, b_ref, o_ref):
            if transpose_rhs:
                o_ref[...] = lax.dot_general(
                    a_ref[...], b_ref[...], (((1,), (1,)), ((), ())),
                    preferred_element_type=jnp.int32)
            else:
                o_ref[...] = jnp.dot(a_ref[...], b_ref[...],
                                     preferred_element_type=jnp.int32)

        out = pl.pallas_call(
            kern, out_shape=jax.ShapeDtypeStruct((m, n), jnp.int32))(a, b)
        out = jax.block_until_ready(out)
        bm = b.astype(jnp.int32).T if transpose_rhs else b.astype(jnp.int32)
        ref = jnp.dot(a.astype(jnp.int32), bm)
        return bool(jnp.array_equal(out, ref))
    except Exception:
        return False


def _pick_tile(dim, cap, align=128):
    """Largest tile <= cap that is the full dim or an `align`-multiple divisor of dim."""
    if dim <= cap:
        return dim
    t = (cap // align) * align
    while t >= align:
        if dim % t == 0:
            return t
        t -= align
    # TODO(synk): pad the leading dim instead of falling back to an untiled dimension.
    return dim


# ----------------------------------------------------------------------------
# Kernel 1: tiled int8 linear.  Epilogue: per-output-column alpha * acc + bias_eff
# (bias_eff = beta * bias precomputed in f32), optional round/clip to int8.
# Shared by the fused QKV projection and out_proj.
# ----------------------------------------------------------------------------
def _linear_kernel(x_ref, wt_ref, alpha_ref, bias_ref, o_ref, acc_ref, *,
                   out_int8, use_int8):
    @pl.when(pl.program_id(2) == 0)
    def _():
        acc_ref[...] = jnp.zeros_like(acc_ref)

    if use_int8:
        # Native int8 MXU (v5e/v6e): exact int32 accumulation, no operand casts.
        acc_ref[...] += jnp.dot(x_ref[...], wt_ref[...],
                                preferred_element_type=jnp.int32)
    else:
        # v7x (no integer MXU): int8 values are exact in bf16, f32 accumulation.
        acc_ref[...] += jnp.dot(x_ref[...].astype(jnp.bfloat16),
                                wt_ref[...].astype(jnp.bfloat16),
                                preferred_element_type=jnp.float32)

    @pl.when(pl.program_id(2) == pl.num_programs(2) - 1)
    def _():
        y = alpha_ref[...] * acc_ref[...].astype(jnp.float32) + bias_ref[...]
        if out_int8:
            o_ref[...] = jnp.clip(jnp.round(y), -128.0, 127.0).astype(jnp.int8)
        else:
            o_ref[...] = y


def int8_linear(x_i8, wt_i8, alpha_vec, bias_eff, *, out_int8,
                tm_cap=512, tn_cap=1024, tk_cap=512):
    """x_i8: (M, K) int8; wt_i8: (K, N) int8 (pre-transposed); alpha/bias: (1, N) f32."""
    M, K = x_i8.shape
    N = wt_i8.shape[1]
    tm = _pick_tile(M, tm_cap, align=8)
    tn = _pick_tile(N, tn_cap, align=128)
    tk = _pick_tile(K, tk_cap, align=128)
    use_int8 = _int8_dot_ok(tm, tk, tn, False)
    out_dtype = jnp.int8 if out_int8 else jnp.float32
    acc_dtype = jnp.int32 if use_int8 else jnp.float32
    cost = pl.CostEstimate(
        flops=2 * M * N * K,
        transcendentals=0,
        bytes_accessed=M * K + K * N + M * N * (1 if out_int8 else 4) + 8 * N)
    kernel = functools.partial(_linear_kernel, out_int8=out_int8, use_int8=use_int8)
    return pl.pallas_call(
        kernel,
        out_shape=jax.ShapeDtypeStruct((M, N), out_dtype),
        grid_spec=pltpu.PrefetchScalarGridSpec(
            num_scalar_prefetch=0,
            grid=(M // tm, N // tn, K // tk),
            in_specs=[
                pl.BlockSpec((tm, tk), lambda i, j, k: (i, k)),
                pl.BlockSpec((tk, tn), lambda i, j, k: (k, j)),
                pl.BlockSpec((1, tn), lambda i, j, k: (0, j)),
                pl.BlockSpec((1, tn), lambda i, j, k: (0, j)),
            ],
            out_specs=pl.BlockSpec((tm, tn), lambda i, j, k: (i, j)),
            scratch_shapes=[pltpu.VMEM((tm, tn), acc_dtype)],
        ),
        compiler_params=pltpu.CompilerParams(
            dimension_semantics=("parallel", "parallel", "arbitrary"),
            vmem_limit_bytes=_vmem_limit_bytes()),
        cost_estimate=cost,
    )(x_i8, wt_i8, alpha_vec, bias_eff)


# ----------------------------------------------------------------------------
# Kernel 2: fused attention core.  Grid = (batch, head_group, q_tile).  Each step
# reads a (tq, W) / (src, W) column slice of the QKV slab (W = lane-aligned group of
# heads), so K/V residency is bounded, and writes a lane-dense (tq, W) int8 output
# block already in the (B, T, E) layout out_proj needs.
#   QK^T -> scale -> +mask -> clamp -> softmax -> *127/round (int8 probs)
#   -> PV -> scale -> round/clip to int8.
# ----------------------------------------------------------------------------
def _attention_kernel(q_ref, k_ref, v_ref, mask_ref, o_ref, *,
                      heads_per_block, head_dim, qk_scale, pv_scale,
                      use_int8_qk, use_int8_pv):
    mask = mask_ref[...]                                  # (tq, src) f32
    outs = []
    for j in range(heads_per_block):                      # tiny static loop (<= 128/Dh)
        lo, hi = j * head_dim, (j + 1) * head_dim
        q_h = q_ref[:, lo:hi]                             # (tq,  Dh) int8
        k_h = k_ref[:, lo:hi]                             # (src, Dh) int8
        v_h = v_ref[:, lo:hi]                             # (src, Dh) int8

        # Q @ K^T without materializing K^T (int8 MXU when available).
        if use_int8_qk:
            s = lax.dot_general(q_h, k_h, (((1,), (1,)), ((), ())),
                                preferred_element_type=jnp.int32).astype(jnp.float32)
        else:
            s = lax.dot_general(q_h.astype(jnp.bfloat16), k_h.astype(jnp.bfloat16),
                                (((1,), (1,)), ((), ())),
                                preferred_element_type=jnp.float32)
        s = jnp.maximum(qk_scale * s + mask, jnp.float32(FINFO_MIN))

        m = jnp.max(s, axis=-1, keepdims=True)
        e = jnp.exp(s - m)
        # Fold the *127 prob quantization into the (tq, 1) normalizer column.
        scale_col = 127.0 / jnp.sum(e, axis=-1, keepdims=True)
        p_q = jnp.round(e * scale_col)                    # int-valued floats in [0, 127]

        if use_int8_pv:
            o = jnp.dot(p_q.astype(jnp.int8), v_h,
                        preferred_element_type=jnp.int32).astype(jnp.float32)
        else:
            o = jnp.dot(p_q.astype(jnp.bfloat16), v_h.astype(jnp.bfloat16),
                        preferred_element_type=jnp.float32)
        outs.append(pv_scale * o)

    slab = outs[0] if len(outs) == 1 else jnp.concatenate(outs, axis=-1)
    # Single lane-dense (tq, heads_per_block*Dh) int8 store (layout out_proj needs).
    o_ref[...] = jnp.clip(jnp.round(slab), -128.0, 127.0).astype(jnp.int8)


def attention_core(qkv, attention_mask, *, num_heads, head_dim, embed_dim,
                   qk_scale, pv_scale):
    """qkv: (B, T, 3E) int8 with columns [q | k | v]; mask: (B, 1, T, T) f32."""
    B, T, _ = qkv.shape
    E = embed_dim
    src = T

    # Smallest head group whose column width is lane aligned (multiple of 128).
    hb = num_heads
    for c in range(1, num_heads + 1):
        if num_heads % c == 0 and (c * head_dim) % 128 == 0:
            hb = c
            break
    width = hb * head_dim
    if width % 128 != 0:
        raise ValueError(f"head group width {width} is not lane aligned")
    groups = num_heads // hb

    tq_cap = 256 if _vmem_limit_bytes() >= 64 * 1024 * 1024 else 128   # smaller on v7x
    tq = _pick_tile(T, tq_cap, align=8)

    use_int8_qk = _int8_dot_ok(tq, head_dim, src, True)
    use_int8_pv = _int8_dot_ok(tq, src, head_dim, False)

    kernel = functools.partial(
        _attention_kernel, heads_per_block=hb, head_dim=head_dim,
        qk_scale=float(qk_scale), pv_scale=float(pv_scale),
        use_int8_qk=use_int8_qk, use_int8_pv=use_int8_pv)
    cost = pl.CostEstimate(
        flops=4 * B * T * src * E,
        transcendentals=B * num_heads * T * src,
        bytes_accessed=3 * B * T * E + 4 * B * T * src + B * T * E)
    # TODO(synk): for very long src (>=8k) add an online-softmax (flash) src tiling to
    # bound the (tq, src) score temporaries; per-group K/V residency is already bounded.
    return pl.pallas_call(
        kernel,
        out_shape=jax.ShapeDtypeStruct((B, T, E), jnp.int8),
        grid_spec=pltpu.PrefetchScalarGridSpec(
            num_scalar_prefetch=0,
            grid=(B, groups, T // tq),
            in_specs=[
                pl.BlockSpec((None, tq, width), lambda b, g, t: (b, t, g)),               # Q
                pl.BlockSpec((None, src, width), lambda b, g, t: (b, 0, groups + g)),     # K
                pl.BlockSpec((None, src, width), lambda b, g, t: (b, 0, 2 * groups + g)), # V
                pl.BlockSpec((None, None, tq, src), lambda b, g, t: (b, 0, t, 0)),        # mask
            ],
            out_specs=pl.BlockSpec((None, tq, width), lambda b, g, t: (b, t, g)),
        ),
        compiler_params=pltpu.CompilerParams(
            dimension_semantics=("parallel", "parallel", "parallel"),
            vmem_limit_bytes=_vmem_limit_bytes()),
        cost_estimate=cost,
    )(qkv, qkv, qkv, attention_mask)


# ----------------------------------------------------------------------------
# One-time parameter preparation (weight transpose / QKV fusion / scale vectors).
# ----------------------------------------------------------------------------
def prepare_params(raw):
    E = raw["q_w"].shape[0]
    qkv_w = jnp.concatenate([raw["q_w"], raw["k_w"], raw["v_w"]], axis=0)   # (3E, E)
    alpha = jnp.concatenate([
        jnp.full((E,), raw["q_a"], jnp.float32),
        jnp.full((E,), raw["k_a"], jnp.float32),
        jnp.full((E,), raw["v_a"], jnp.float32)]).reshape(1, 3 * E)
    bias_eff = jnp.concatenate([
        raw["q_beta"] * raw["q_b"].astype(jnp.float32),
        raw["k_beta"] * raw["k_b"].astype(jnp.float32),
        raw["v_beta"] * raw["v_b"].astype(jnp.float32)]).reshape(1, 3 * E)
    return {
        "num_heads": raw["num_heads"],
        "qkv_wt": qkv_w.T,                                   # (E, 3E), transposed once
        "qkv_alpha": alpha,
        "qkv_bias_eff": bias_eff,
        "qk_a": raw["qk_a"],
        "pv_a": raw["pv_a"],
        "o_wt": raw["o_w"].T,                                # (E, E)
        "o_alpha": jnp.full((1, E), raw["o_a"], jnp.float32),
        "o_bias_eff": raw["o_b"].astype(jnp.float32).reshape(1, E),
    }


# ----------------------------------------------------------------------------
# Full module forward (glue in JAX, hot paths in Pallas).
# ----------------------------------------------------------------------------
def int8_opt_attention_forward(hidden_i8, params, attention_mask):
    bsz, tgt_len, embed_dim = hidden_i8.shape
    num_heads = params["num_heads"]
    head_dim = embed_dim // num_heads

    x2d = hidden_i8.reshape(bsz * tgt_len, embed_dim)

    # Fused q/k/v projection: activations stream from HBM once, int8 out (B*T, 3E).
    qkv2d = int8_linear(x2d, params["qkv_wt"], params["qkv_alpha"],
                        params["qkv_bias_eff"], out_int8=True)
    qkv = qkv2d.reshape(bsz, tgt_len, 3 * embed_dim)

    # past_key_value in the reference (B, H, T, Dh) layout (cache only, off the
    # attention compute path).
    # TODO(synk): if the cache layout is negotiable, return the (B, T, E) K/V column
    # slices of the QKV slab directly and skip this transpose relayout.
    def heads(cols):
        return cols.reshape(bsz, tgt_len, num_heads, head_dim).transpose(0, 2, 1, 3)

    key_states = heads(qkv[:, :, embed_dim:2 * embed_dim])
    value_states = heads(qkv[:, :, 2 * embed_dim:])

    # Attention core reads q/k/v head-group slices straight out of the QKV slab; output
    # is already the (B, T, E) layout out_proj needs (no transposes on the hot path).
    attn_i8 = attention_core(
        qkv, attention_mask, num_heads=num_heads, head_dim=head_dim,
        embed_dim=embed_dim, qk_scale=params["qk_a"], pv_scale=params["pv_a"])

    out2d = int8_linear(attn_i8.reshape(bsz * tgt_len, embed_dim),
                        params["o_wt"], params["o_alpha"], params["o_bias_eff"],
                        out_int8=False)
    out = out2d.reshape(bsz, tgt_len, embed_dim)

    # TODO(synk): cross-attention / past_key_value-concat / layer_head_mask /
    # output_attentions branches and the seq_len==16 torch.save debug dumps are omitted.
    attn_probs_reshaped = None  # output_attentions=False path
    return out, attn_probs_reshaped, (key_states, value_states)


# ----------------------------------------------------------------------------
# Pure-JAX reference (exact integer accumulation) for correctness checking.
# ----------------------------------------------------------------------------
def _reference_forward(hidden_i8, raw, attention_mask):
    bsz, T, E = hidden_i8.shape
    H = raw["num_heads"]
    Dh = E // H
    x = hidden_i8.reshape(bsz * T, E).astype(jnp.int32)

    def lin_i8(w, b, a, beta):
        acc = jnp.dot(x, w.T.astype(jnp.int32)).astype(jnp.float32)
        y = a * acc + beta * b.astype(jnp.float32)
        return jnp.clip(jnp.round(y), -128.0, 127.0).astype(jnp.int8)

    def shape_heads(t):
        return t.reshape(bsz, T, H, Dh).transpose(0, 2, 1, 3)

    q = shape_heads(lin_i8(raw["q_w"], raw["q_b"], raw["q_a"], raw["q_beta"]))
    k = shape_heads(lin_i8(raw["k_w"], raw["k_b"], raw["k_a"], raw["k_beta"]))
    v = shape_heads(lin_i8(raw["v_w"], raw["v_b"], raw["v_a"], raw["v_beta"]))

    s = raw["qk_a"] * jnp.einsum("bhtd,bhsd->bhts", q.astype(jnp.int32),
                                 k.astype(jnp.int32)).astype(jnp.float32)
    s = jnp.maximum(s + attention_mask, FINFO_MIN)
    p = jax.nn.softmax(s, axis=-1)
    p_q = jnp.round(p * 127.0).astype(jnp.int32)
    o = raw["pv_a"] * jnp.einsum("bhts,bhsd->bhtd", p_q,
                                 v.astype(jnp.int32)).astype(jnp.float32)
    attn_i8 = jnp.clip(jnp.round(o), -128.0, 127.0).astype(jnp.int8)
    attn2d = attn_i8.transpose(0, 2, 1, 3).reshape(bsz * T, E).astype(jnp.int32)
    out = (raw["o_a"] * jnp.dot(attn2d, raw["o_w"].T.astype(jnp.int32)).astype(jnp.float32)
           + raw["o_b"])
    return out.reshape(bsz, T, E), (k, v)


# ----------------------------------------------------------------------------
# Deterministic parameter / input construction and smoke test.
# ----------------------------------------------------------------------------
def _rand_i8(key, shape, lo, hi):
    return jax.random.randint(key, shape, lo, hi, dtype=jnp.int32).astype(jnp.int8)


if __name__ == "__main__":
    bsz, seq, embed_dim, num_heads = 2, 8, 256, 8
    head_dim = embed_dim // num_heads

    root = jax.random.PRNGKey(0)
    ks = jax.random.split(root, 10)

    raw_params = {
        "num_heads": num_heads,
        # W8A8B8O8Linear q/k/v: int8 weight (out,in), int8 bias, scales alpha/beta
        "q_w": _rand_i8(ks[0], (embed_dim, embed_dim), -127, 127),
        "k_w": _rand_i8(ks[1], (embed_dim, embed_dim), -127, 127),
        "v_w": _rand_i8(ks[2], (embed_dim, embed_dim), -127, 127),
        "q_b": _rand_i8(ks[3], (embed_dim,), -32, 32),
        "k_b": _rand_i8(ks[4], (embed_dim,), -32, 32),
        "v_b": _rand_i8(ks[5], (embed_dim,), -32, 32),
        "q_a": 5e-4, "k_a": 5e-4, "v_a": 5e-4,
        "q_beta": 1.0, "k_beta": 1.0, "v_beta": 1.0,
        # BMM_S8T_S8N_F32T / BMM_S8T_S8N_S8T scales
        "qk_a": 2e-3,
        "pv_a": 2e-2,
        # W8A8BFP32OFP32Linear out_proj: int8 weight, fp32 bias, scale alpha
        "o_w": _rand_i8(ks[6], (embed_dim, embed_dim), -127, 127),
        "o_b": (0.1 * jax.random.normal(ks[7], (embed_dim,))).astype(jnp.float32),
        "o_a": 1e-4,
    }

    hidden_states = _rand_i8(ks[8], (bsz, seq, embed_dim), -64, 64)

    # Causal additive attention mask, (bsz, 1, tgt, src) float32, 0 / finfo.min.
    causal = jnp.triu(jnp.full((seq, seq), FINFO_MIN, dtype=jnp.float32), k=1)
    attention_mask = jnp.broadcast_to(causal, (bsz, 1, seq, seq))

    params = prepare_params(raw_params)

    attn_out, attn_probs, past_kv = int8_opt_attention_forward(
        hidden_states, params, attention_mask)
    attn_out = jax.block_until_ready(attn_out)
    jax.block_until_ready(past_kv)

    # Shape / sanity checks.
    assert attn_out.shape == (bsz, seq, embed_dim) and attn_out.dtype == jnp.float32
    assert past_kv[0].shape == (bsz, num_heads, seq, head_dim)
    assert past_kv[0].dtype == jnp.int8 and past_kv[1].dtype == jnp.int8
    assert bool(jnp.all(jnp.isfinite(attn_out)))

    # Numerical check vs pure-JAX reference (exact integer accumulation).
    ref_out, ref_kv = _reference_forward(hidden_states, raw_params, attention_mask)
    assert bool(jnp.array_equal(past_kv[0], ref_kv[0]))     # projections are bit-exact
    assert bool(jnp.array_equal(past_kv[1], ref_kv[1]))
    assert float(jnp.max(jnp.abs(attn_out - ref_out))) < 0.5

    print("KERNEL_OK")
</pallas_src>

<mosaic_0001>
module attributes {stable_mosaic.version = 11 : i64} {
  func.func @kern(%arg0: memref<16x256xi8, #tpu.memory_space<vmem>>, %arg1: memref<256x768xi8, #tpu.memory_space<vmem>>, %arg2: memref<16x768xi32, #tpu.memory_space<vmem>>) attributes {dimension_semantics = [], scalar_prefetch = 0 : i64, scratch_operands = 0 : i64, tpu.core_type = #tpu.core_type<tc>} {
    %c0 = arith.constant 0 : index
    %c0_0 = arith.constant 0 : index
    %0 = vector.load %arg0[%c0, %c0_0] : memref<16x256xi8, #tpu.memory_space<vmem>>, vector<16x256xi8>
    %c0_1 = arith.constant 0 : index
    %c0_2 = arith.constant 0 : index
    %1 = vector.load %arg1[%c0_1, %c0_2] : memref<256x768xi8, #tpu.memory_space<vmem>>, vector<256x768xi8>
    %cst = arith.constant dense<0> : vector<16x768xi32>
    %2 = tpu.matmul %0, %1, %cst {dimension_numbers = #tpu.dot_dimension_numbers<[1], [0], [0], [1], [0, 0, 1, 1], [], []>} : vector<16x256xi8>, vector<256x768xi8>, vector<16x768xi32> -> vector<16x768xi32>
    %c0_3 = arith.constant 0 : index
    %c0_4 = arith.constant 0 : index
    %3 = vector.load %arg2[%c0_3, %c0_4] : memref<16x768xi32, #tpu.memory_space<vmem>>, vector<16x768xi32>
    tpu.vector_store %arg2[%c0_3, %c0_4], %2 {strides = array<i32>} : memref<16x768xi32, #tpu.memory_space<vmem>>, vector<16x768xi32>,
    return
  }
}

module attributes {stable_mosaic.version = 11 : i64} {
  func.func @_linear_kernel(%arg0: i32, %arg1: i32, %arg2: i32, %arg3: memref<16x256xi8, #tpu.memory_space<vmem>>, %arg4: memref<256x768xi8, #tpu.memory_space<vmem>>, %arg5: memref<1x768xf32, #tpu.memory_space<vmem>>, %arg6: memref<1x768xf32, #tpu.memory_space<vmem>>, %arg7: memref<16x768xi8, #tpu.memory_space<vmem>>, %arg8: memref<16x768xf32, #tpu.memory_space<vmem>>) attributes {dimension_semantics = [#tpu.dimension_semantics<parallel>, #tpu.dimension_semantics<parallel>, #tpu.dimension_semantics<arbitrary>], iteration_bounds = array<i64: 1, 1, 1>, scalar_prefetch = 0 : i64, scratch_operands = 1 : i64, tpu.core_type = #tpu.core_type<tc>, window_params = [{transform_indices = @transform_0, window_bounds = array<i64: 16, 256>}, {transform_indices = @transform_1, window_bounds = array<i64: 256, 768>}, {transform_indices = @transform_2, window_bounds = array<i64: 1, 768>}, {transform_indices = @transform_3, window_bounds = array<i64: 1, 768>}, {transform_indices = @transform_4, window_bounds = array<i64: 16, 768>}]} {
    %c0_i32 = arith.constant 0 : i32
    %0 = arith.cmpi eq, %arg2, %c0_i32 : i32
    %1 = arith.extui %0 : i1 to i32
    %c0_i32_0 = arith.constant 0 : i32
    %2 = arith.cmpi ne, %1, %c0_i32_0 : i32
    scf.if %2 {
      %cst_10 = arith.constant 0.000000e+00 : f32
      %14 = vector.broadcast %cst_10 : f32 to vector<16x768xf32>
      %c0_11 = arith.constant 0 : index
      %c0_12 = arith.constant 0 : index
      %15 = vector.load %arg8[%c0_11, %c0_12] : memref<16x768xf32, #tpu.memory_space<vmem>>, vector<16x768xf32>
      tpu.vector_store %arg8[%c0_11, %c0_12], %14 {strides = array<i32>} : memref<16x768xf32, #tpu.memory_space<vmem>>, vector<16x768xf32>,
    } else {
    }
    %c0 = arith.constant 0 : index
    %c0_1 = arith.constant 0 : index
    %3 = vector.load %arg8[%c0, %c0_1] : memref<16x768xf32, #tpu.memory_space<vmem>>, vector<16x768xf32>
    %c0_2 = arith.constant 0 : index
    %c0_3 = arith.constant 0 : index
    %4 = vector.load %arg3[%c0_2, %c0_3] : memref<16x256xi8, #tpu.memory_space<vmem>>, vector<16x256xi8>
    %5 = arith.sitofp %4 : vector<16x256xi8> to vector<16x256xbf16>
    %c0_4 = arith.constant 0 : index
    %c0_5 = arith.constant 0 : index
    %6 = vector.load %arg4[%c0_4, %c0_5] : memref<256x768xi8, #tpu.memory_space<vmem>>, vector<256x768xi8>
    %7 = arith.sitofp %6 : vector<256x768xi8> to vector<256x768xbf16>
    %cst = arith.constant dense<0.000000e+00> : vector<16x768xf32>
    %8 = tpu.matmul %5, %7, %cst {dimension_numbers = #tpu.dot_dimension_numbers<[1], [0], [0], [1], [0, 0, 1, 1], [], []>} : vector<16x256xbf16>, vector<256x768xbf16>, vector<16x768xf32> -> vector<16x768xf32>
    %9 = arith.addf %3, %8 : vector<16x768xf32>
    %c0_6 = arith.constant 0 : index
    %c0_7 = arith.constant 0 : index
    %10 = vector.load %arg8[%c0_6, %c0_7] : memref<16x768xf32, #tpu.memory_space<vmem>>, vector<16x768xf32>
    tpu.vector_store %arg8[%c0_6, %c0_7], %9 {strides = array<i32>} : memref<16x768xf32, #tpu.memory_space<vmem>>, vector<16x768xf32>,
    %c0_i32_8 = arith.constant 0 : i32
    %11 = arith.cmpi eq, %arg2, %c0_i32_8 : i32
    %12 = arith.extui %11 : i1 to i32
    %c0_i32_9 = arith.constant 0 : i32
    %13 = arith.cmpi ne, %12, %c0_i32_9 : i32
    scf.if %13 {
      %c0_10 = arith.constant 0 : index
      %c0_11 = arith.constant 0 : index
      %14 = vector.load %arg5[%c0_10, %c0_11] : memref<1x768xf32, #tpu.memory_space<vmem>>, vector<1x768xf32>
      %c0_12 = arith.constant 0 : index
      %c0_13 = arith.constant 0 : index
      %15 = vector.load %arg8[%c0_12, %c0_13] : memref<16x768xf32, #tpu.memory_space<vmem>>, vector<16x768xf32>
      %16 = vector.broadcast %14 : vector<1x768xf32> to vector<16x768xf32>
      %17 = arith.mulf %16, %15 : vector<16x768xf32>
      %c0_14 = arith.constant 0 : index
      %c0_15 = arith.constant 0 : index
      %18 = vector.load %arg6[%c0_14, %c0_15] : memref<1x768xf32, #tpu.memory_space<vmem>>, vector<1x768xf32>
      %19 = vector.broadcast %18 : vector<1x768xf32> to vector<16x768xf32>
      %20 = arith.addf %17, %19 : vector<16x768xf32>
      %21 = math.roundeven %20 : vector<16x768xf32>
      %cst_16 = arith.constant -1.280000e+02 : f32
      %cst_17 = arith.constant 1.270000e+02 : f32
      %22 = vector.broadcast %cst_16 : f32 to vector<16x768xf32>
      %23 = arith.maximumf %22, %21 : vector<16x768xf32>
      %24 = vector.broadcast %cst_17 : f32 to vector<16x768xf32>
      %25 = arith.minimumf %24, %23 : vector<16x768xf32>
      %26 = arith.fptosi %25 : vector<16x768xf32> to vector<16x768xi8>
      %c0_18 = arith.constant 0 : index
      %c0_19 = arith.constant 0 : index
      %27 = vector.load %arg7[%c0_18, %c0_19] : memref<16x768xi8, #tpu.memory_space<vmem>>, vector<16x768xi8>
      tpu.vector_store %arg7[%c0_18, %c0_19], %26 {strides = array<i32>} : memref<16x768xi8, #tpu.memory_space<vmem>>, vector<16x768xi8>,
    } else {
    }
    return
  }
  func.func @transform_0(%arg0: i32, %arg1: i32, %arg2: i32) -> (i32, i32) {
    %c0_i32 = arith.constant 0 : i32
    return %arg0, %arg2 : i32, i32
  }
  func.func @transform_1(%arg0: i32, %arg1: i32, %arg2: i32) -> (i32, i32) {
    %c0_i32 = arith.constant 0 : i32
    return %arg2, %arg1 : i32, i32
  }
  func.func @transform_2(%arg0: i32, %arg1: i32, %arg2: i32) -> (i32, i32) {
    %c0_i32 = arith.constant 0 : i32
    %c0_i32_0 = arith.constant 0 : i32
    return %c0_i32, %arg1 : i32, i32
  }
  func.func @transform_3(%arg0: i32, %arg1: i32, %arg2: i32) -> (i32, i32) {
    %c0_i32 = arith.constant 0 : i32
    %c0_i32_0 = arith.constant 0 : i32
    return %c0_i32, %arg1 : i32, i32
  }
  func.func @transform_4(%arg0: i32, %arg1: i32, %arg2: i32) -> (i32, i32) {
    %c0_i32 = arith.constant 0 : i32
    return %arg0, %arg1 : i32, i32
  }
}

</mosaic_0001>

<llo_original>
// kernel: tpu_custom_call.1
$region0: #{tpu_custom_call.1}
  #allocation0 [shape = 'u32[]', space=smem, size = 0x4, offset = 0x4, fixed_abs, tag = 'smem constant byte address 0x4 - core index']
  #allocation1 [shape = 'u32[72,128]{1,0:T(1,128)}', space=vmem, size = 0x9000, scoped, tag = 'internal scratch']
  %s0 = inlined_call_operand.hbm [shape: s8[16,256], index: 0, kind: input, shape index: {}]
  %s1 = inlined_call_operand.hbm [shape: s8[256,768], index: 1, kind: input, shape index: {}]
  %s2 = inlined_call_operand.hbm [shape: s32[16,768], index: 2, kind: output, shape index: {}]
  %s3 = sld [smem:[#allocation0]]
  $region26: #{tpu_custom_call.1} parent=0
    _
  %s5 = ssub.s32 1, %s3
  %s6 = scalar_select 0, %s5, %s3
  $region1: #{tpu_custom_call.1} parent=0
    #allocation2 [shape = 'u8[4096]{0}', space=vmem, size = 0x1000, scoped, tag = 'input window, operand 0, single buffered']
    #allocation3 [shape = 's32[1]{0}', space=sflag, size = 0x4, scoped, tag = 'scoped memory for tpu_custom_call.1']
    #allocation4 [shape = 's32[1]{0}', space=sflag, size = 0x4, scoped, tag = 'scoped memory for tpu_custom_call.1']
    #allocation5 [shape = 'u8[196608]{0}', space=vmem, size = 0x30000, scoped, tag = 'input window, operand 1, single buffered']
    #allocation6 [shape = 's32[1]{0}', space=sflag, size = 0x4, scoped, tag = 'scoped memory for tpu_custom_call.1']
    #allocation7 [shape = 'u8[49152]{0}', space=vmem, size = 0xc000, scoped, tag = 'output window, operand 0, single buffered']
    %7 = vsyncpa [#allocation3], 0
    %8 = vsyncpa [#allocation6], 0
    %9 = vsyncpa [#allocation4], 0
    // Predicated region
    $region2: #{tpu_custom_call.1} parent=1 // pred_check
      _
    $region3: #{tpu_custom_call.1} parent=1 // pred_check_branch
      %11 = sbr.rel (0) target = $region5
    $region4: #{tpu_custom_call.1} parent=1 // pred_region
      %13 = vsyncadd [#allocation3], 0
      %s14 = sshll.u32 %s0, 4
      %s15 = int_to_ptr.hbm [resolvable:$true] %s14
      %s16 = sshll.u32 [#allocation2], 4
      %s17 = int_to_ptr.vmem [resolvable:$true] %s16
      %22 = dma.hbm_to_vmem [thread:$0]  %s15, 128, %s17, [#allocation3], 64, 64, 4
    $region5: #{tpu_custom_call.1} parent=1 // pred_fallthru
      _
    // Predicated region
    $region6: #{tpu_custom_call.1} parent=1 // pred_check
      _
    $region7: #{tpu_custom_call.1} parent=1 // pred_check_branch
      %24 = sbr.rel (0) target = $region9
    $region8: #{tpu_custom_call.1} parent=1 // pred_region
      %26 = vsyncadd [#allocation6], 0
      %s27 = sshll.u32 %s1, 4
      %s28 = int_to_ptr.hbm [resolvable:$true] %s27
      %s29 = sshll.u32 [#allocation5], 4
      %s30 = int_to_ptr.vmem [resolvable:$true] %s29
      %35 = dma.hbm_to_vmem [thread:$0]  %s28, 6144, %s30, [#allocation6], 768, 768, 48
    $region9: #{tpu_custom_call.1} parent=1 // pred_fallthru
      _
    // Predicated region
    $region10: #{tpu_custom_call.1} parent=1 // pred_check
      _
    $region11: #{tpu_custom_call.1} parent=1 // pred_check_branch
      %37 = sbr.rel (0) target = $region13
    $region12: #{tpu_custom_call.1} parent=1 // pred_region
      %39 = dma.done [#allocation3], 128
    $region13: #{tpu_custom_call.1} parent=1 // pred_fallthru
      _
    // Predicated region
    $region14: #{tpu_custom_call.1} parent=1 // pred_check
      _
    $region15: #{tpu_custom_call.1} parent=1 // pred_check_branch
      %41 = sbr.rel (0) target = $region17
    $region16: #{tpu_custom_call.1} parent=1 // pred_region
      %43 = dma.done [#allocation6], 6144
    $region17: #{tpu_custom_call.1} parent=1 // pred_fallthru
      _
    %v44 = vld [vmem:[#allocation2] sm:$0xf]
    %v45 = vld [vmem:[#allocation2 + $0x4] sm:$0xf]
    %v46 = vld [vmem:[#allocation5] sm:$0xff]
    %v47 = vld [vmem:[#allocation5 + $0x8] sm:$0xff]
    %v48 = vld [vmem:[#allocation5 + $0x10] sm:$0xff]
    %v49 = vld [vmem:[#allocation5 + $0x18] sm:$0xff]
    %v50 = vld [vmem:[#allocation5 + $0x20] sm:$0xff]
    %v51 = vld [vmem:[#allocation5 + $0x28] sm:$0xff]
    %v52 = vld [vmem:[#allocation5 + $0x30] sm:$0xff]
    %v53 = vld [vmem:[#allocation5 + $0x38] sm:$0xff]
    %v54 = vld [vmem:[#allocation5 + $0x40] sm:$0xff]
    %v55 = vld [vmem:[#allocation5 + $0x48] sm:$0xff]
    %v56 = vld [vmem:[#allocation5 + $0x50] sm:$0xff]
    %v57 = vld [vmem:[#allocation5 + $0x58] sm:$0xff]
    %v58 = vld [vmem:[#allocation5 + $0x60] sm:$0xff]
    %v59 = vld [vmem:[#allocation5 + $0x68] sm:$0xff]
    %v60 = vld [vmem:[#allocation5 + $0x70] sm:$0xff]
    %v61 = vld [vmem:[#allocation5 + $0x78] sm:$0xff]
    %v62 = vld [vmem:[#allocation5 + $0x80] sm:$0xff]
    %v63 = vld [vmem:[#allocation5 + $0x88] sm:$0xff]
    %v64 = vld [vmem:[#allocation5 + $0x90] sm:$0xff]
    %v65 = vld [vmem:[#allocation5 + $0x98] sm:$0xff]
    %v66 = vld [vmem:[#allocation5 + $0xa0] sm:$0xff]
    %v67 = vld [vmem:[#allocation5 + $0xa8] sm:$0xff]
    %v68 = vld [vmem:[#allocation5 + $0xb0] sm:$0xff]
    %v69 = vld [vmem:[#allocation5 + $0xb8] sm:$0xff]
    %v70 = vld [vmem:[#allocation5 + $0xc0] sm:$0xff]
    %v71 = vld [vmem:[#allocation5 + $0xc8] sm:$0xff]
    %v72 = vld [vmem:[#allocation5 + $0xd0] sm:$0xff]
    %v73 = vld [vmem:[#allocation5 + $0xd8] sm:$0xff]
    %v74 = vld [vmem:[#allocation5 + $0xe0] sm:$0xff]
    %v75 = vld [vmem:[#allocation5 + $0xe8] sm:$0xff]
    %v76 = vld [vmem:[#allocation5 + $0xf0] sm:$0xff]
    %v77 = vld [vmem:[#allocation5 + $0xf8] sm:$0xff]
    %v78 = vld [vmem:[#allocation5 + $0x100] sm:$0xff]
    %v79 = vld [vmem:[#allocation5 + $0x108] sm:$0xff]
    %v80 = vld [vmem:[#allocation5 + $0x110] sm:$0xff]
    %v81 = vld [vmem:[#allocation5 + $0x118] sm:$0xff]
    %v82 = vld [vmem:[#allocation5 + $0x120] sm:$0xff]
    %v83 = vld [vmem:[#allocation5 + $0x128] sm:$0xff]
    %v84 = vld [vmem:[#allocation5 + $0x130] sm:$0xff]
    %v85 = vld [vmem:[#allocation5 + $0x138] sm:$0xff]
    %v86 = vld [vmem:[#allocation5 + $0x140] sm:$0xff]
    %v87 = vld [vmem:[#allocation5 + $0x148] sm:$0xff]
    %v88 = vld [vmem:[#allocation5 + $0x150] sm:$0xff]
    %v89 = vld [vmem:[#allocation5 + $0x158] sm:$0xff]
    %v90 = vld [vmem:[#allocation5 + $0x160] sm:$0xff]
    %v91 = vld [vmem:[#allocation5 + $0x168] sm:$0xff]
    %v92 = vld [vmem:[#allocation5 + $0x170] sm:$0xff]
    %v93 = vld [vmem:[#allocation5 + $0x178] sm:$0xff]
    %v94 = vunpack.c.0.s8 %v44
    %v95 = vunpack.c.1.s8 %v44
    %v96 = vunpack.c.0.s8 %v45
    %v97 = vunpack.c.1.s8 %v45
    %v98 = vpack.c.b16 %v96, %v94
    %v99 = vpack.c.b8 %v98, %v98
    %v100 = vpack.c.b16 %v97, %v95
    %v101 = vpack.c.b8 %v100, %v100
    %102 = vmatpush.s8.msra.mxu0 %v64
    %103 = vmatpush.s8.msra.mxu0 %v58
    %104 = vmatpush.s8.msra.mxu0 %v52
    %105 = vmatpush.s8.msra.mxu0 %v46
    %106 = vmatmul.s8.gmra.mxu0 %v99
    %v107 = vpop.s32.mrf.mxu0
    %v108 = vadd.s32 0, %v107
    %v109 = vpop.s32.mrf.mxu0
    %v110 = vadd.s32 0, %v109
    %v111 = vpop.s32.mrf.mxu0
    %v112 = vpop.s32.mrf.mxu0
    %113 = vdwg.mxu0
    %114 = vmatpush.s8.msra.mxu0 %v88
    %115 = vmatpush.s8.msra.mxu0 %v82
    %116 = vmatpush.s8.msra.mxu0 %v76
    %117 = vmatpush.s8.msra.mxu0 %v70
    %118 = vmatmul.s8.gmra.mxu0 %v101
    %v119 = vpop.s32.mrf.mxu0
    %v120 = vadd.s32 %v108, %v119
    %v121 = vpop.s32.mrf.mxu0
    %v122 = vadd.s32 %v110, %v121
    %v123 = vpop.s32.mrf.mxu0
    %v124 = vpop.s32.mrf.mxu0
    %125 = vdwg.mxu0
    %126 = vmatpush.s8.msra.mxu0 %v65
    %127 = vmatpush.s8.msra.mxu0 %v59
    %128 = vmatpush.s8.msra.mxu0 %v53
    %129 = vmatpush.s8.msra.mxu0 %v47
    %130 = vmatmul.s8.gmra.mxu0 %v99
    %v131 = vpop.s32.mrf.mxu0
    %v132 = vadd.s32 0, %v131
    %v133 = vpop.s32.mrf.mxu0
    %v134 = vadd.s32 0, %v133
    %v135 = vpop.s32.mrf.mxu0
    %v136 = vpop.s32.mrf.mxu0
    %137 = vdwg.mxu0
    %138 = vmatpush.s8.msra.mxu0 %v89
    %139 = vmatpush.s8.msra.mxu0 %v83
    %140 = vmatpush.s8.msra.mxu0 %v77
    %141 = vmatpush.s8.msra.mxu0 %v71
    %142 = vmatmul.s8.gmra.mxu0 %v101
    %v143 = vpop.s32.mrf.mxu0
    %v144 = vadd.s32 %v132, %v143
    %v145 = vpop.s32.mrf.mxu0
    %v146 = vadd.s32 %v134, %v145
    %v147 = vpop.s32.mrf.mxu0
    %v148 = vpop.s32.mrf.mxu0
    %149 = vdwg.mxu0
    %150 = vmatpush.s8.msra.mxu0 %v66
    %151 = vmatpush.s8.msra.mxu0 %v60
    %152 = vmatpush.s8.msra.mxu0 %v54
    %153 = vmatpush.s8.msra.mxu0 %v48
    %154 = vmatmul.s8.gmra.mxu0 %v99
    %v155 = vpop.s32.mrf.mxu0
    %v156 = vadd.s32 0, %v155
    %v157 = vpop.s32.mrf.mxu0
    %v158 = vadd.s32 0, %v157
    %v159 = vpop.s32.mrf.mxu0
    %v160 = vpop.s32.mrf.mxu0
    %161 = vdwg.mxu0
    %162 = vmatpush.s8.msra.mxu0 %v90
    %163 = vmatpush.s8.msra.mxu0 %v84
    %164 = vmatpush.s8.msra.mxu0 %v78
    %165 = vmatpush.s8.msra.mxu0 %v72
    %166 = vmatmul.s8.gmra.mxu0 %v101
    %v167 = vpop.s32.mrf.mxu0
    %v168 = vadd.s32 %v156, %v167
    %v169 = vpop.s32.mrf.mxu0
    %v170 = vadd.s32 %v158, %v169
    %v171 = vpop.s32.mrf.mxu0
    %v172 = vpop.s32.mrf.mxu0
    %173 = vdwg.mxu0
    %174 = vmatpush.s8.msra.mxu0 %v67
    %175 = vmatpush.s8.msra.mxu0 %v61
    %176 = vmatpush.s8.msra.mxu0 %v55
    %177 = vmatpush.s8.msra.mxu0 %v49
    %178 = vmatmul.s8.gmra.mxu0 %v99
    %v179 = vpop.s32.mrf.mxu0
    %v180 = vadd.s32 0, %v179
    %v181 = vpop.s32.mrf.mxu0
    %v182 = vadd.s32 0, %v181
    %v183 = vpop.s32.mrf.mxu0
    %v184 = vpop.s32.mrf.mxu0
    %185 = vdwg.mxu0
    %186 = vmatpush.s8.msra.mxu0 %v91
    %187 = vmatpush.s8.msra.mxu0 %v85
    %188 = vmatpush.s8.msra.mxu0 %v79
    %189 = vmatpush.s8.msra.mxu0 %v73
    %190 = vmatmul.s8.gmra.mxu0 %v101
    %v191 = vpop.s32.mrf.mxu0
    %v192 = vadd.s32 %v180, %v191
    %v193 = vpop.s32.mrf.mxu0
    %v194 = vadd.s32 %v182, %v193
    %v195 = vpop.s32.mrf.mxu0
    %v196 = vpop.s32.mrf.mxu0
    %197 = vdwg.mxu0
    %198 = vmatpush.s8.msra.mxu0 %v68
    %199 = vmatpush.s8.msra.mxu0 %v62
    %200 = vmatpush.s8.msra.mxu0 %v56
    %201 = vmatpush.s8.msra.mxu0 %v50
    %202 = vmatmul.s8.gmra.mxu0 %v99
    %v203 = vpop.s32.mrf.mxu0
    %v204 = vadd.s32 0, %v203
    %v205 = vpop.s32.mrf.mxu0
    %v206 = vadd.s32 0, %v205
    %v207 = vpop.s32.mrf.mxu0
    %v208 = vpop.s32.mrf.mxu0
    %209 = vdwg.mxu0
    %210 = vmatpush.s8.msra.mxu0 %v92
    %211 = vmatpush.s8.msra.mxu0 %v86
    %212 = vmatpush.s8.msra.mxu0 %v80
    %213 = vmatpush.s8.msra.mxu0 %v74
    %214 = vmatmul.s8.gmra.mxu0 %v101
    %v215 = vpop.s32.mrf.mxu0
    %v216 = vadd.s32 %v204, %v215
    %v217 = vpop.s32.mrf.mxu0
    %v218 = vadd.s32 %v206, %v217
    %v219 = vpop.s32.mrf.mxu0
    %v220 = vpop.s32.mrf.mxu0
    %221 = vdwg.mxu0
    %222 = vmatpush.s8.msra.mxu0 %v69
    %223 = vmatpush.s8.msra.mxu0 %v63
    %224 = vmatpush.s8.msra.mxu0 %v57
    %225 = vmatpush.s8.msra.mxu0 %v51
    %226 = vmatmul.s8.gmra.mxu0 %v99
    %v227 = vpop.s32.mrf.mxu0
    %v228 = vadd.s32 0, %v227
    %v229 = vpop.s32.mrf.mxu0
    %v230 = vadd.s32 0, %v229
    %v231 = vpop.s32.mrf.mxu0
    %v232 = vpop.s32.mrf.mxu0
    %233 = vdwg.mxu0
    %234 = vmatpush.s8.msra.mxu0 %v93
    %235 = vmatpush.s8.msra.mxu0 %v87
    %236 = vmatpush.s8.msra.mxu0 %v81
    %237 = vmatpush.s8.msra.mxu0 %v75
    %238 = vmatmul.s8.gmra.mxu0 %v101
    %v239 = vpop.s32.mrf.mxu0
    %v240 = vadd.s32 %v228, %v239
    %v241 = vpop.s32.mrf.mxu0
    %v242 = vadd.s32 %v230, %v241
    %v243 = vpop.s32.mrf.mxu0
    %v244 = vpop.s32.mrf.mxu0
    %245 = vdwg.mxu0
    %246 = vst [vmem:[#allocation7] sm:$0xff] %v120
    %247 = vst [vmem:[#allocation7 + $0x8] sm:$0xff] %v144
    %248 = vst [vmem:[#allocation7 + $0x10] sm:$0xff] %v168
    %249 = vst [vmem:[#allocation7 + $0x18] sm:$0xff] %v192
    %250 = vst [vmem:[#allocation7 + $0x20] sm:$0xff] %v216
    %251 = vst [vmem:[#allocation7 + $0x28] sm:$0xff] %v240
    %252 = vst [vmem:[#allocation7 + $0x30] sm:$0xff] %v122
    %253 = vst [vmem:[#allocation7 + $0x38] sm:$0xff] %v146
    %254 = vst [vmem:[#allocation7 + $0x40] sm:$0xff] %v170
    %255 = vst [vmem:[#allocation7 + $0x48] sm:$0xff] %v194
    %256 = vst [vmem:[#allocation7 + $0x50] sm:$0xff] %v218
    %257 = vst [vmem:[#allocation7 + $0x58] sm:$0xff] %v242
    // Predicated region
    $region18: #{tpu_custom_call.1} parent=1 // pred_check
      _
    $region19: #{tpu_custom_call.1} parent=1 // pred_check_branch
      %259 = sbr.rel (0) target = $region21
    $region20: #{tpu_custom_call.1} parent=1 // pred_region
      %261 = vsyncadd [#allocation4], 0
      %s262 = sshll.u32 [#allocation7], 4
      %s263 = int_to_ptr.vmem [resolvable:$true] %s262
      %s264 = sshll.u32 %s2, 4
      %s265 = int_to_ptr.hbm [resolvable:$true] %s264
      %270 = dma.vmem_to_hbm [thread:$0]  %s263, 1536, %s265, [#allocation4], 768, 768, 48
    $region21: #{tpu_custom_call.1} parent=1 // pred_fallthru
      _
    // Predicated region
    $region22: #{tpu_custom_call.1} parent=1 // pred_check
      _
    $region23: #{tpu_custom_call.1} parent=1 // pred_check_branch
      %272 = sbr.rel (0) target = $region25
    $region24: #{tpu_custom_call.1} parent=1 // pred_region
      %274 = dma.done [#allocation4], 1536
    $region25: #{tpu_custom_call.1} parent=1 // pred_fallthru
      _
    %275 = vsyncpa [#allocation3], 1
    %276 = vsyncpa [#allocation6], 1
    %277 = vsyncpa [#allocation4], 1

// kernel: tpu_custom_call.1
$region0: #{tpu_custom_call.1}
  #allocation0 [shape = 'u32[]', space=smem, size = 0x4, offset = 0x4, fixed_abs, tag = 'smem constant byte address 0x4 - core index']
  #allocation1 [shape = 'u32[72,128]{1,0:T(1,128)}', space=vmem, size = 0x9000, scoped, tag = 'internal scratch']
  #allocation2 [shape = 'f32[16,768]{1,0:T(8,128)}', space=vmem, size = 0xc000, scoped, tag = 'scratch operand']
  %s0 = inlined_call_operand.hbm [shape: s8[16,256], index: 0, kind: input, shape index: {}]
  %s1 = inlined_call_operand.hbm [shape: s8[256,768], index: 1, kind: input, shape index: {}]
  %s2 = inlined_call_operand.hbm [shape: f32[1,768], index: 2, kind: input, shape index: {}]
  %s3 = inlined_call_operand.hbm [shape: f32[1,768], index: 3, kind: input, shape index: {}]
  %s4 = inlined_call_operand.hbm [shape: s8[16,768], index: 4, kind: output, shape index: {}]
  %s5 = sld [smem:[#allocation0]]
  $region50: #{tpu_custom_call.1} parent=0
    _
  %s7 = ssub.s32 1, %s5
  %s8 = scalar_select 0, %s7, %s5
  $region1: #{tpu_custom_call.1} parent=0
    #allocation3 [shape = 'u8[4096]{0}', space=vmem, size = 0x1000, scoped, tag = 'input window, operand 0, single buffered']
    #allocation4 [shape = 's32[1]{0}', space=sflag, size = 0x4, scoped, tag = 'scoped memory for tpu_custom_call.1']
    #allocation5 [shape = 's32[1]{0}', space=sflag, size = 0x4, scoped, tag = 'scoped memory for tpu_custom_call.1']
    #allocation6 [shape = 'u8[196608]{0}', space=vmem, size = 0x30000, scoped, tag = 'input window, operand 1, single buffered']
    #allocation7 [shape = 's32[1]{0}', space=sflag, size = 0x4, scoped, tag = 'scoped memory for tpu_custom_call.1']
    #allocation8 [shape = 'u8[3072]{0}', space=vmem, size = 0xc00, scoped, tag = 'input window, operand 2, single buffered']
    #allocation9 [shape = 'u8[3072]{0}', space=vmem, size = 0xc00, scoped, tag = 'input window, operand 3, single buffered']
    #allocation10 [shape = 's32[1]{0}', space=sflag, size = 0x4, scoped, tag = 'scoped memory for tpu_custom_call.1']
    #allocation11 [shape = 'u8[12288]{0}', space=vmem, size = 0x3000, scoped, tag = 'output window, operand 0, single buffered']
    %9 = vsyncpa [#allocation4], 0
    %10 = vsyncpa [#allocation7], 0
    %11 = vsyncpa [#allocation10], 0
    %12 = vsyncpa [#allocation5], 0
    // Predicated region
    $region2: #{tpu_custom_call.1} parent=1 // pred_check
      _
    $region3: #{tpu_custom_call.1} parent=1 // pred_check_branch
      %14 = sbr.rel (0) target = $region5
    $region4: #{tpu_custom_call.1} parent=1 // pred_region
      %16 = vsyncadd [#allocation4], 0
      %s17 = sshll.u32 %s0, 4
      %s18 = int_to_ptr.hbm [resolvable:$true] %s17
      %s19 = sshll.u32 [#allocation3], 4
      %s20 = int_to_ptr.vmem [resolvable:$true] %s19
      %25 = dma.hbm_to_vmem [thread:$0]  %s18, 128, %s20, [#allocation4], 64, 64, 4
    $region5: #{tpu_custom_call.1} parent=1 // pred_fallthru
      _
    // Predicated region
    $region6: #{tpu_custom_call.1} parent=1 // pred_check
      _
    $region7: #{tpu_custom_call.1} parent=1 // pred_check_branch
      %27 = sbr.rel (0) target = $region9
    $region8: #{tpu_custom_call.1} parent=1 // pred_region
      %29 = vsyncadd [#allocation7], 0
      %s30 = sshll.u32 %s1, 4
      %s31 = int_to_ptr.hbm [resolvable:$true] %s30
      %s32 = sshll.u32 [#allocation6], 4
      %s33 = int_to_ptr.vmem [resolvable:$true] %s32
      %38 = dma.hbm_to_vmem [thread:$0]  %s31, 6144, %s33, [#allocation7], 768, 768, 48
    $region9: #{tpu_custom_call.1} parent=1 // pred_fallthru
      _
    // Predicated region
    $region10: #{tpu_custom_call.1} parent=1 // pred_check
      _
    $region11: #{tpu_custom_call.1} parent=1 // pred_check_branch
      %40 = sbr.rel (0) target = $region13
    $region12: #{tpu_custom_call.1} parent=1 // pred_region
      %42 = vsyncadd [#allocation7], 0
      %s44 = sshll.u32 %s2, 4
      %s45 = int_to_ptr.hbm [resolvable:$true] %s44
      %s46 = sshll.u32 [#allocation8], 4
      %s47 = int_to_ptr.vmem [resolvable:$true] %s46
      %49 = dma.hbm_to_vmem [thread:$0]  %s45, 96, %s47, [#allocation7]
    $region13: #{tpu_custom_call.1} parent=1 // pred_fallthru
      _
    // Predicated region
    $region14: #{tpu_custom_call.1} parent=1 // pred_check
      _
    $region15: #{tpu_custom_call.1} parent=1 // pred_check_branch
      %51 = sbr.rel (0) target = $region17
    $region16: #{tpu_custom_call.1} parent=1 // pred_region
      %53 = vsyncadd [#allocation10], 0
      %s55 = sshll.u32 %s3, 4
      %s56 = int_to_ptr.hbm [resolvable:$true] %s55
      %s57 = sshll.u32 [#allocation9], 4
      %s58 = int_to_ptr.vmem [resolvable:$true] %s57
      %60 = dma.hbm_to_vmem [thread:$0]  %s56, 96, %s58, [#allocation10]
    $region17: #{tpu_custom_call.1} parent=1 // pred_fallthru
      _
    // Predicated region
    $region18: #{tpu_custom_call.1} parent=1 // pred_check
      _
    $region19: #{tpu_custom_call.1} parent=1 // pred_check_branch
      %62 = sbr.rel (0) target = $region21
    $region20: #{tpu_custom_call.1} parent=1 // pred_region
      %64 = dma.done [#allocation4], 128
    $region21: #{tpu_custom_call.1} parent=1 // pred_fallthru
      _
    // Predicated region
    $region22: #{tpu_custom_call.1} parent=1 // pred_check
      _
    $region23: #{tpu_custom_call.1} parent=1 // pred_check_branch
      %66 = sbr.rel (0) target = $region25
    $region24: #{tpu_custom_call.1} parent=1 // pred_region
      %68 = dma.done [#allocation7], 6144
    $region25: #{tpu_custom_call.1} parent=1 // pred_fallthru
      _
    // Predicated region
    $region26: #{tpu_custom_call.1} parent=1 // pred_check
      _
    $region27: #{tpu_custom_call.1} parent=1 // pred_check_branch
      %70 = sbr.rel (0) target = $region29
    $region28: #{tpu_custom_call.1} parent=1 // pred_region
      %72 = dma.done [#allocation7], 96
    $region29: #{tpu_custom_call.1} parent=1 // pred_fallthru
      _
    // Predicated region
    $region30: #{tpu_custom_call.1} parent=1 // pred_check
      _
    $region31: #{tpu_custom_call.1} parent=1 // pred_check_branch
      %74 = sbr.rel (0) target = $region33
    $region32: #{tpu_custom_call.1} parent=1 // pred_region
      %76 = dma.done [#allocation10], 96
    $region33: #{tpu_custom_call.1} parent=1 // pred_fallthru
      _
    %p77 = scmp.eq.s32.totalorder 0, 0
    // Predicated region
    $region34: #{tpu_custom_call.1} parent=1 // pred_check
      %p78 = pneg %p77
    $region35: #{tpu_custom_call.1} parent=1 // pred_check_branch
      %80 = sbr.rel (%p78) target = $region37
    $region36: #{tpu_custom_call.1} parent=1 // pred_region
      %81 = vst [vmem:[#allocation2] sm:$0xff] 0.0
      %82 = vst [vmem:[#allocation2 + $0x8] sm:$0xff] 0.0
      %83 = vst [vmem:[#allocation2 + $0x10] sm:$0xff] 0.0
      %84 = vst [vmem:[#allocation2 + $0x18] sm:$0xff] 0.0
      %85 = vst [vmem:[#allocation2 + $0x20] sm:$0xff] 0.0
      %86 = vst [vmem:[#allocation2 + $0x28] sm:$0xff] 0.0
      %87 = vst [vmem:[#allocation2 + $0x30] sm:$0xff] 0.0
      %88 = vst [vmem:[#allocation2 + $0x38] sm:$0xff] 0.0
      %89 = vst [vmem:[#allocation2 + $0x40] sm:$0xff] 0.0
      %90 = vst [vmem:[#allocation2 + $0x48] sm:$0xff] 0.0
      %91 = vst [vmem:[#allocation2 + $0x50] sm:$0xff] 0.0
      %92 = vst [vmem:[#allocation2 + $0x58] sm:$0xff] 0.0
    $region37: #{tpu_custom_call.1} parent=1 // pred_fallthru
      _
    %v93 = vld [vmem:[#allocation2] sm:$0xff]
    %v94 = vld [vmem:[#allocation2 + $0x8] sm:$0xff]
    %v95 = vld [vmem:[#allocation2 + $0x10] sm:$0xff]
    %v96 = vld [vmem:[#allocation2 + $0x18] sm:$0xff]
    %v97 = vld [vmem:[#allocation2 + $0x20] sm:$0xff]
    %v98 = vld [vmem:[#allocation2 + $0x28] sm:$0xff]
    %v99 = vld [vmem:[#allocation2 + $0x30] sm:$0xff]
    %v100 = vld [vmem:[#allocation2 + $0x38] sm:$0xff]
    %v101 = vld [vmem:[#allocation2 + $0x40] sm:$0xff]
    %v102 = vld [vmem:[#allocation2 + $0x48] sm:$0xff]
    %v103 = vld [vmem:[#allocation2 + $0x50] sm:$0xff]
    %v104 = vld [vmem:[#allocation2 + $0x58] sm:$0xff]
    %v105 = vld [vmem:[#allocation3] sm:$0xf]
    %v106 = vld [vmem:[#allocation3 + $0x4] sm:$0xf]
    %v107 = vunpack.c.0.s8 %v105
    %v108 = vunpack.c.1.s8 %v105
    %v109 = vunpack.c.0.s8 %v106
    %v110 = vunpack.c.1.s8 %v106
    %v111 = vcvt.s32.f32 %v107
    %v112 = vcvt.s32.f32 %v108
    %v113 = vcvt.s32.f32 %v109
    %v114 = vcvt.s32.f32 %v110
    %v115 = vpack.c.bf16 %v113, %v111
    %v116 = vpack.c.bf16 %v114, %v112
    %v117 = vld [vmem:[#allocation6] sm:$0xff]
    %v118 = vld [vmem:[#allocation6 + $0x8] sm:$0xff]
    %v119 = vld [vmem:[#allocation6 + $0x10] sm:$0xff]
    %v120 = vld [vmem:[#allocation6 + $0x18] sm:$0xff]
    %v121 = vld [vmem:[#allocation6 + $0x20] sm:$0xff]
    %v122 = vld [vmem:[#allocation6 + $0x28] sm:$0xff]
    %v123 = vld [vmem:[#allocation6 + $0x30] sm:$0xff]
    %v124 = vld [vmem:[#allocation6 + $0x38] sm:$0xff]
    %v125 = vld [vmem:[#allocation6 + $0x40] sm:$0xff]
    %v126 = vld [vmem:[#allocation6 + $0x48] sm:$0xff]
    %v127 = vld [vmem:[#allocation6 + $0x50] sm:$0xff]
    %v128 = vld [vmem:[#allocation6 + $0x58] sm:$0xff]
    %v129 = vld [vmem:[#allocation6 + $0x60] sm:$0xff]
    %v130 = vld [vmem:[#allocation6 + $0x68] sm:$0xff]
    %v131 = vld [vmem:[#allocation6 + $0x70] sm:$0xff]
    %v132 = vld [vmem:[#allocation6 + $0x78] sm:$0xff]
    %v133 = vld [vmem:[#allocation6 + $0x80] sm:$0xff]
    %v134 = vld [vmem:[#allocation6 + $0x88] sm:$0xff]
    %v135 = vld [vmem:[#allocation6 + $0x90] sm:$0xff]
    %v136 = vld [vmem:[#allocation6 + $0x98] sm:$0xff]
    %v137 = vld [vmem:[#allocation6 + $0xa0] sm:$0xff]
    %v138 = vld [vmem:[#allocation6 + $0xa8] sm:$0xff]
    %v139 = vld [vmem:[#allocation6 + $0xb0] sm:$0xff]
    %v140 = vld [vmem:[#allocation6 + $0xb8] sm:$0xff]
    %v141 = vld [vmem:[#allocation6 + $0xc0] sm:$0xff]
    %v142 = vld [vmem:[#allocation6 + $0xc8] sm:$0xff]
    %v143 = vld [vmem:[#allocation6 + $0xd0] sm:$0xff]
    %v144 = vld [vmem:[#allocation6 + $0xd8] sm:$0xff]
    %v145 = vld [vmem:[#allocation6 + $0xe0] sm:$0xff]
    %v146 = vld [vmem:[#allocation6 + $0xe8] sm:$0xff]
    %v147 = vld [vmem:[#allocation6 + $0xf0] sm:$0xff]
    %v148 = vld [vmem:[#allocation6 + $0xf8] sm:$0xff]
    %v149 = vld [vmem:[#allocation6 + $0x100] sm:$0xff]
    %v150 = vld [vmem:[#allocation6 + $0x108] sm:$0xff]
    %v151 = vld [vmem:[#allocation6 + $0x110] sm:$0xff]
    %v152 = vld [vmem:[#allocation6 + $0x118] sm:$0xff]
    %v153 = vld [vmem:[#allocation6 + $0x120] sm:$0xff]
    %v154 = vld [vmem:[#allocation6 + $0x128] sm:$0xff]
    %v155 = vld [vmem:[#allocation6 + $0x130] sm:$0xff]
    %v156 = vld [vmem:[#allocation6 + $0x138] sm:$0xff]
    %v157 = vld [vmem:[#allocation6 + $0x140] sm:$0xff]
    %v158 = vld [vmem:[#allocation6 + $0x148] sm:$0xff]
    %v159 = vld [vmem:[#allocation6 + $0x150] sm:$0xff]
    %v160 = vld [vmem:[#allocation6 + $0x158] sm:$0xff]
    %v161 = vld [vmem:[#allocation6 + $0x160] sm:$0xff]
    %v162 = vld [vmem:[#allocation6 + $0x168] sm:$0xff]
    %v163 = vld [vmem:[#allocation6 + $0x170] sm:$0xff]
    %v164 = vld [vmem:[#allocation6 + $0x178] sm:$0xff]
    %v165 = vunpack.c.0.s8 %v117
    %v166 = vunpack.c.0.s8 %v118
    %v167 = vunpack.c.0.s8 %v119
    %v168 = vunpack.c.0.s8 %v120
    %v169 = vunpack.c.0.s8 %v121
    %v170 = vunpack.c.0.s8 %v122
    %v171 = vunpack.c.1.s8 %v117
    %v172 = vunpack.c.1.s8 %v118
    %v173 = vunpack.c.1.s8 %v119
    %v174 = vunpack.c.1.s8 %v120
    %v175 = vunpack.c.1.s8 %v121
    %v176 = vunpack.c.1.s8 %v122
    %v177 = vunpack.c.2.s8 %v117
    %v178 = vunpack.c.2.s8 %v118
    %v179 = vunpack.c.2.s8 %v119
    %v180 = vunpack.c.2.s8 %v120
    %v181 = vunpack.c.2.s8 %v121
    %v182 = vunpack.c.2.s8 %v122
    %v183 = vunpack.c.3.s8 %v117
    %v184 = vunpack.c.3.s8 %v118
    %v185 = vunpack.c.3.s8 %v119
    %v186 = vunpack.c.3.s8 %v120
    %v187 = vunpack.c.3.s8 %v121
    %v188 = vunpack.c.3.s8 %v122
    %v189 = vunpack.c.0.s8 %v123
    %v190 = vunpack.c.0.s8 %v124
    %v191 = vunpack.c.0.s8 %v125
    %v192 = vunpack.c.0.s8 %v126
    %v193 = vunpack.c.0.s8 %v127
    %v194 = vunpack.c.0.s8 %v128
    %v195 = vunpack.c.1.s8 %v123
    %v196 = vunpack.c.1.s8 %v124
    %v197 = vunpack.c.1.s8 %v125
    %v198 = vunpack.c.1.s8 %v126
    %v199 = vunpack.c.1.s8 %v127
    %v200 = vunpack.c.1.s8 %v128
    %v201 = vunpack.c.2.s8 %v123
    %v202 = vunpack.c.2.s8 %v124
    %v203 = vunpack.c.2.s8 %v125
    %v204 = vunpack.c.2.s8 %v126
    %v205 = vunpack.c.2.s8 %v127
    %v206 = vunpack.c.2.s8 %v128
    %v207 = vunpack.c.3.s8 %v123
    %v208 = vunpack.c.3.s8 %v124
    %v209 = vunpack.c.3.s8 %v125
    %v210 = vunpack.c.3.s8 %v126
    %v211 = vunpack.c.3.s8 %v127
    %v212 = vunpack.c.3.s8 %v128
    %v213 = vunpack.c.0.s8 %v129
    %v214 = vunpack.c.0.s8 %v130
    %v215 = vunpack.c.0.s8 %v131
    %v216 = vunpack.c.0.s8 %v132
    %v217 = vunpack.c.0.s8 %v133
    %v218 = vunpack.c.0.s8 %v134
    %v219 = vunpack.c.1.s8 %v129
    %v220 = vunpack.c.1.s8 %v130
    %v221 = vunpack.c.1.s8 %v131
    %v222 = vunpack.c.1.s8 %v132
    %v223 = vunpack.c.1.s8 %v133
    %v224 = vunpack.c.1.s8 %v134
    %v225 = vunpack.c.2.s8 %v129
    %v226 = vunpack.c.2.s8 %v130
    %v227 = vunpack.c.2.s8 %v131
    %v228 = vunpack.c.2.s8 %v132
    %v229 = vunpack.c.2.s8 %v133
    %v230 = vunpack.c.2.s8 %v134
    %v231 = vunpack.c.3.s8 %v129
    %v232 = vunpack.c.3.s8 %v130
    %v233 = vunpack.c.3.s8 %v131
    %v234 = vunpack.c.3.s8 %v132
    %v235 = vunpack.c.3.s8 %v133
    %v236 = vunpack.c.3.s8 %v134
    %v237 = vunpack.c.0.s8 %v135
    %v238 = vunpack.c.0.s8 %v136
    %v239 = vunpack.c.0.s8 %v137
    %v240 = vunpack.c.0.s8 %v138
    %v241 = vunpack.c.0.s8 %v139
    %v242 = vunpack.c.0.s8 %v140
    %v243 = vunpack.c.1.s8 %v135
    %v244 = vunpack.c.1.s8 %v136
    %v245 = vunpack.c.1.s8 %v137
    %v246 = vunpack.c.1.s8 %v138
    %v247 = vunpack.c.1.s8 %v139
    %v248 = vunpack.c.1.s8 %v140
    %v249 = vunpack.c.2.s8 %v135
    %v250 = vunpack.c.2.s8 %v136
    %v251 = vunpack.c.2.s8 %v137
    %v252 = vunpack.c.2.s8 %v138
    %v253 = vunpack.c.2.s8 %v139
    %v254 = vunpack.c.2.s8 %v140
    %v255 = vunpack.c.3.s8 %v135
    %v256 = vunpack.c.3.s8 %v136
    %v257 = vunpack.c.3.s8 %v137
    %v258 = vunpack.c.3.s8 %v138
    %v259 = vunpack.c.3.s8 %v139
    %v260 = vunpack.c.3.s8 %v140
    %v261 = vunpack.c.0.s8 %v141
    %v262 = vunpack.c.0.s8 %v142
    %v263 = vunpack.c.0.s8 %v143
    %v264 = vunpack.c.0.s8 %v144
    %v265 = vunpack.c.0.s8 %v145
    %v266 = vunpack.c.0.s8 %v146
    %v267 = vunpack.c.1.s8 %v141
    %v268 = vunpack.c.1.s8 %v142
    %v269 = vunpack.c.1.s8 %v143
    %v270 = vunpack.c.1.s8 %v144
    %v271 = vunpack.c.1.s8 %v145
    %v272 = vunpack.c.1.s8 %v146
    %v273 = vunpack.c.2.s8 %v141
    %v274 = vunpack.c.2.s8 %v142
    %v275 = vunpack.c.2.s8 %v143
    %v276 = vunpack.c.2.s8 %v144
    %v277 = vunpack.c.2.s8 %v145
    %v278 = vunpack.c.2.s8 %v146
    %v279 = vunpack.c.3.s8 %v141
    %v280 = vunpack.c.3.s8 %v142
    %v281 = vunpack.c.3.s8 %v143
    %v282 = vunpack.c.3.s8 %v144
    %v283 = vunpack.c.3.s8 %v145
    %v284 = vunpack.c.3.s8 %v146
    %v285 = vunpack.c.0.s8 %v147
    %v286 = vunpack.c.0.s8 %v148
    %v287 = vunpack.c.0.s8 %v149
    %v288 = vunpack.c.0.s8 %v150
    %v289 = vunpack.c.0.s8 %v151
    %v290 = vunpack.c.0.s8 %v152
    %v291 = vunpack.c.1.s8 %v147
    %v292 = vunpack.c.1.s8 %v148
    %v293 = vunpack.c.1.s8 %v149
    %v294 = vunpack.c.1.s8 %v150
    %v295 = vunpack.c.1.s8 %v151
    %v296 = vunpack.c.1.s8 %v152
    %v297 = vunpack.c.2.s8 %v147
    %v298 = vunpack.c.2.s8 %v148
    %v299 = vunpack.c.2.s8 %v149
    %v300 = vunpack.c.2.s8 %v150
    %v301 = vunpack.c.2.s8 %v151
    %v302 = vunpack.c.2.s8 %v152
    %v303 = vunpack.c.3.s8 %v147
    %v304 = vunpack.c.3.s8 %v148
    %v305 = vunpack.c.3.s8 %v149
    %v306 = vunpack.c.3.s8 %v150
    %v307 = vunpack.c.3.s8 %v151
    %v308 = vunpack.c.3.s8 %v152
    %v309 = vunpack.c.0.s8 %v153
    %v310 = vunpack.c.0.s8 %v154
    %v311 = vunpack.c.0.s8 %v155
    %v312 = vunpack.c.0.s8 %v156
    %v313 = vunpack.c.0.s8 %v157
    %v314 = vunpack.c.0.s8 %v158
    %v315 = vunpack.c.1.s8 %v153
    %v316 = vunpack.c.1.s8 %v154
    %v317 = vunpack.c.1.s8 %v155
    %v318 = vunpack.c.1.s8 %v156
    %v319 = vunpack.c.1.s8 %v157
    %v320 = vunpack.c.1.s8 %v158
    %v321 = vunpack.c.2.s8 %v153
    %v322 = vunpack.c.2.s8 %v154
    %v323 = vunpack.c.2.s8 %v155
    %v324 = vunpack.c.2.s8 %v156
    %v325 = vunpack.c.2.s8 %v157
    %v326 = vunpack.c.2.s8 %v158
    %v327 = vunpack.c.3.s8 %v153
    %v328 = vunpack.c.3.s8 %v154
    %v329 = vunpack.c.3.s8 %v155
    %v330 = vunpack.c.3.s8 %v156
    %v331 = vunpack.c.3.s8 %v157
    %v332 = vunpack.c.3.s8 %v158
    %v333 = vunpack.c.0.s8 %v159
    %v334 = vunpack.c.0.s8 %v160
    %v335 = vunpack.c.0.s8 %v161
    %v336 = vunpack.c.0.s8 %v162
    %v337 = vunpack.c.0.s8 %v163
    %v338 = vunpack.c.0.s8 %v164
    %v339 = vunpack.c.1.s8 %v159
    %v340 = vunpack.c.1.s8 %v160
    %v341 = vunpack.c.1.s8 %v161
    %v342 = vunpack.c.1.s8 %v162
    %v343 = vunpack.c.1.s8 %v163
    %v344 = vunpack.c.1.s8 %v164
    %v345 = vunpack.c.2.s8 %v159
    %v346 = vunpack.c.2.s8 %v160
    %v347 = vunpack.c.2.s8 %v161
    %v348 = vunpack.c.2.s8 %v162
    %v349 = vunpack.c.2.s8 %v163
    %v350 = vunpack.c.2.s8 %v164
    %v351 = vunpack.c.3.s8 %v159
    %v352 = vunpack.c.3.s8 %v160
    %v353 = vunpack.c.3.s8 %v161
    %v354 = vunpack.c.3.s8 %v162
    %v355 = vunpack.c.3.s8 %v163
    %v356 = vunpack.c.3.s8 %v164
    %v357 = vcvt.s32.f32 %v165
    %v358 = vcvt.s32.f32 %v166
    %v359 = vcvt.s32.f32 %v167
    %v360 = vcvt.s32.f32 %v168
    %v361 = vcvt.s32.f32 %v169
    %v362 = vcvt.s32.f32 %v170
    %v363 = vcvt.s32.f32 %v171
    %v364 = vcvt.s32.f32 %v172
    %v365 = vcvt.s32.f32 %v173
    %v366 = vcvt.s32.f32 %v174
    %v367 = vcvt.s32.f32 %v175
    %v368 = vcvt.s32.f32 %v176
    %v369 = vcvt.s32.f32 %v177
    %v370 = vcvt.s32.f32 %v178
    %v371 = vcvt.s32.f32 %v179
    %v372 = vcvt.s32.f32 %v180
    %v373 = vcvt.s32.f32 %v181
    %v374 = vcvt.s32.f32 %v182
    %v375 = vcvt.s32.f32 %v183
    %v376 = vcvt.s32.f32 %v184
    %v377 = vcvt.s32.f32 %v185
    %v378 = vcvt.s32.f32 %v186
    %v379 = vcvt.s32.f32 %v187
    %v380 = vcvt.s32.f32 %v188
    %v381 = vcvt.s32.f32 %v189
    %v382 = vcvt.s32.f32 %v190
    %v383 = vcvt.s32.f32 %v191
    %v384 = vcvt.s32.f32 %v192
    %v385 = vcvt.s32.f32 %v193
    %v386 = vcvt.s32.f32 %v194
    %v387 = vcvt.s32.f32 %v195
    %v388 = vcvt.s32.f32 %v196
    %v389 = vcvt.s32.f32 %v197
    %v390 = vcvt.s32.f32 %v198
    %v391 = vcvt.s32.f32 %v199
    %v392 = vcvt.s32.f32 %v200
    %v393 = vcvt.s32.f32 %v201
    %v394 = vcvt.s32.f32 %v202
    %v395 = vcvt.s32.f32 %v203
    %v396 = vcvt.s32.f32 %v204
    %v397 = vcvt.s32.f32 %v205
    %v398 = vcvt.s32.f32 %v206
    %v399 = vcvt.s32.f32 %v207
    %v400 = vcvt.s32.f32 %v208
    %v401 = vcvt.s32.f32 %v209
    %v402 = vcvt.s32.f32 %v210
    %v403 = vcvt.s32.f32 %v211
    %v404 = vcvt.s32.f32 %v212
    %v405 = vcvt.s32.f32 %v213
    %v406 = vcvt.s32.f32 %v214
    %v407 = vcvt.s32.f32 %v215
    %v408 = vcvt.s32.f32 %v216
    %v409 = vcvt.s32.f32 %v217
    %v410 = vcvt.s32.f32 %v218
    %v411 = vcvt.s32.f32 %v219
    %v412 = vcvt.s32.f32 %v220
    %v413 = vcvt.s32.f32 %v221
    %v414 = vcvt.s32.f32 %v222
    %v415 = vcvt.s32.f32 %v223
    %v416 = vcvt.s32.f32 %v224
    %v417 = vcvt.s32.f32 %v225
    %v418 = vcvt.s32.f32 %v226
    %v419 = vcvt.s32.f32 %v227
    %v420 = vcvt.s32.f32 %v228
    %v421 = vcvt.s32.f32 %v229
    %v422 = vcvt.s32.f32 %v230
    %v423 = vcvt.s32.f32 %v231
    %v424 = vcvt.s32.f32 %v232
    %v425 = vcvt.s32.f32 %v233
    %v426 = vcvt.s32.f32 %v234
    %v427 = vcvt.s32.f32 %v235
    %v428 = vcvt.s32.f32 %v236
    %v429 = vcvt.s32.f32 %v237
    %v430 = vcvt.s32.f32 %v238
    %v431 = vcvt.s32.f32 %v239
    %v432 = vcvt.s32.f32 %v240
    %v433 = vcvt.s32.f32 %v241
    %v434 = vcvt.s32.f32 %v242
    %v435 = vcvt.s32.f32 %v243
    %v436 = vcvt.s32.f32 %v244
    %v437 = vcvt.s32.f32 %v245
    %v438 = vcvt.s32.f32 %v246
    %v439 = vcvt.s32.f32 %v247
    %v440 = vcvt.s32.f32 %v248
    %v441 = vcvt.s32.f32 %v249
    %v442 = vcvt.s32.f32 %v250
    %v443 = vcvt.s32.f32 %v251
    %v444 = vcvt.s32.f32 %v252
    %v445 = vcvt.s32.f32 %v253
    %v446 = vcvt.s32.f32 %v254
    %v447 = vcvt.s32.f32 %v255
    %v448 = vcvt.s32.f32 %v256
    %v449 = vcvt.s32.f32 %v257
    %v450 = vcvt.s32.f32 %v258
    %v451 = vcvt.s32.f32 %v259
    %v452 = vcvt.s32.f32 %v260
    %v453 = vcvt.s32.f32 %v261
    %v454 = vcvt.s32.f32 %v262
    %v455 = vcvt.s32.f32 %v263
    %v456 = vcvt.s32.f32 %v264
    %v457 = vcvt.s32.f32 %v265
    %v458 = vcvt.s32.f32 %v266
    %v459 = vcvt.s32.f32 %v267
    %v460 = vcvt.s32.f32 %v268
    %v461 = vcvt.s32.f32 %v269
    %v462 = vcvt.s32.f32 %v270
    %v463 = vcvt.s32.f32 %v271
    %v464 = vcvt.s32.f32 %v272
    %v465 = vcvt.s32.f32 %v273
    %v466 = vcvt.s32.f32 %v274
    %v467 = vcvt.s32.f32 %v275
    %v468 = vcvt.s32.f32 %v276
    %v469 = vcvt.s32.f32 %v277
    %v470 = vcvt.s32.f32 %v278
    %v471 = vcvt.s32.f32 %v279
    %v472 = vcvt.s32.f32 %v280
    %v473 = vcvt.s32.f32 %v281
    %v474 = vcvt.s32.f32 %v282
    %v475 = vcvt.s32.f32 %v283
    %v476 = vcvt.s32.f32 %v284
    %v477 = vcvt.s32.f32 %v285
    %v478 = vcvt.s32.f32 %v286
    %v479 = vcvt.s32.f32 %v287
    %v480 = vcvt.s32.f32 %v288
    %v481 = vcvt.s32.f32 %v289
    %v482 = vcvt.s32.f32 %v290
    %v483 = vcvt.s32.f32 %v291
    %v484 = vcvt.s32.f32 %v292
    %v485 = vcvt.s32.f32 %v293
    %v486 = vcvt.s32.f32 %v294
    %v487 = vcvt.s32.f32 %v295
    %v488 = vcvt.s32.f32 %v296
    %v489 = vcvt.s32.f32 %v297
    %v490 = vcvt.s32.f32 %v298
    %v491 = vcvt.s32.f32 %v299
    %v492 = vcvt.s32.f32 %v300
    %v493 = vcvt.s32.f32 %v301
    %v494 = vcvt.s32.f32 %v302
    %v495 = vcvt.s32.f32 %v303
    %v496 = vcvt.s32.f32 %v304
    %v497 = vcvt.s32.f32 %v305
    %v498 = vcvt.s32.f32 %v306
    %v499 = vcvt.s32.f32 %v307
    %v500 = vcvt.s32.f32 %v308
    %v501 = vcvt.s32.f32 %v309
    %v502 = vcvt.s32.f32 %v310
    %v503 = vcvt.s32.f32 %v311
    %v504 = vcvt.s32.f32 %v312
    %v505 = vcvt.s32.f32 %v313
    %v506 = vcvt.s32.f32 %v314
    %v507 = vcvt.s32.f32 %v315
    %v508 = vcvt.s32.f32 %v316
    %v509 = vcvt.s32.f32 %v317
    %v510 = vcvt.s32.f32 %v318
    %v511 = vcvt.s32.f32 %v319
    %v512 = vcvt.s32.f32 %v320
    %v513 = vcvt.s32.f32 %v321
    %v514 = vcvt.s32.f32 %v322
    %v515 = vcvt.s32.f32 %v323
    %v516 = vcvt.s32.f32 %v324
    %v517 = vcvt.s32.f32 %v325
    %v518 = vcvt.s32.f32 %v326
    %v519 = vcvt.s32.f32 %v327
    %v520 = vcvt.s32.f32 %v328
    %v521 = vcvt.s32.f32 %v329
    %v522 = vcvt.s32.f32 %v330
    %v523 = vcvt.s32.f32 %v331
    %v524 = vcvt.s32.f32 %v332
    %v525 = vcvt.s32.f32 %v333
    %v526 = vcvt.s32.f32 %v334
    %v527 = vcvt.s32.f32 %v335
    %v528 = vcvt.s32.f32 %v336
    %v529 = vcvt.s32.f32 %v337
    %v530 = vcvt.s32.f32 %v338
    %v531 = vcvt.s32.f32 %v339
    %v532 = vcvt.s32.f32 %v340
    %v533 = vcvt.s32.f32 %v341
    %v534 = vcvt.s32.f32 %v342
    %v535 = vcvt.s32.f32 %v343
    %v536 = vcvt.s32.f32 %v344
    %v537 = vcvt.s32.f32 %v345
    %v538 = vcvt.s32.f32 %v346
    %v539 = vcvt.s32.f32 %v347
    %v540 = vcvt.s32.f32 %v348
    %v541 = vcvt.s32.f32 %v349
    %v542 = vcvt.s32.f32 %v350
    %v543 = vcvt.s32.f32 %v351
    %v544 = vcvt.s32.f32 %v352
    %v545 = vcvt.s32.f32 %v353
    %v546 = vcvt.s32.f32 %v354
    %v547 = vcvt.s32.f32 %v355
    %v548 = vcvt.s32.f32 %v356
    %v549 = vpack.c.bf16 %v363, %v357
    %v550 = vpack.c.bf16 %v364, %v358
    %v551 = vpack.c.bf16 %v365, %v359
    %v552 = vpack.c.bf16 %v366, %v360
    %v553 = vpack.c.bf16 %v367, %v361
    %v554 = vpack.c.bf16 %v368, %v362
    %v555 = vpack.c.bf16 %v375, %v369
    %v556 = vpack.c.bf16 %v376, %v370
    %v557 = vpack.c.bf16 %v377, %v371
    %v558 = vpack.c.bf16 %v378, %v372
    %v559 = vpack.c.bf16 %v379, %v373
    %v560 = vpack.c.bf16 %v380, %v374
    %v561 = vpack.c.bf16 %v387, %v381
    %v562 = vpack.c.bf16 %v388, %v382
    %v563 = vpack.c.bf16 %v389, %v383
    %v564 = vpack.c.bf16 %v390, %v384
    %v565 = vpack.c.bf16 %v391, %v385
    %v566 = vpack.c.bf16 %v392, %v386
    %v567 = vpack.c.bf16 %v399, %v393
    %v568 = vpack.c.bf16 %v400, %v394
    %v569 = vpack.c.bf16 %v401, %v395
    %v570 = vpack.c.bf16 %v402, %v396
    %v571 = vpack.c.bf16 %v403, %v397
    %v572 = vpack.c.bf16 %v404, %v398
    %v573 = vpack.c.bf16 %v411, %v405
    %v574 = vpack.c.bf16 %v412, %v406
    %v575 = vpack.c.bf16 %v413, %v407
    %v576 = vpack.c.bf16 %v414, %v408
    %v577 = vpack.c.bf16 %v415, %v409
    %v578 = vpack.c.bf16 %v416, %v410
    %v579 = vpack.c.bf16 %v423, %v417
    %v580 = vpack.c.bf16 %v424, %v418
    %v581 = vpack.c.bf16 %v425, %v419
    %v582 = vpack.c.bf16 %v426, %v420
    %v583 = vpack.c.bf16 %v427, %v421
    %v584 = vpack.c.bf16 %v428, %v422
    %v585 = vpack.c.bf16 %v435, %v429
    %v586 = vpack.c.bf16 %v436, %v430
    %v587 = vpack.c.bf16 %v437, %v431
    %v588 = vpack.c.bf16 %v438, %v432
    %v589 = vpack.c.bf16 %v439, %v433
    %v590 = vpack.c.bf16 %v440, %v434
    %v591 = vpack.c.bf16 %v447, %v441
    %v592 = vpack.c.bf16 %v448, %v442
    %v593 = vpack.c.bf16 %v449, %v443
    %v594 = vpack.c.bf16 %v450, %v444
    %v595 = vpack.c.bf16 %v451, %v445
    %v596 = vpack.c.bf16 %v452, %v446
    %v597 = vpack.c.bf16 %v459, %v453
    %v598 = vpack.c.bf16 %v460, %v454
    %v599 = vpack.c.bf16 %v461, %v455
    %v600 = vpack.c.bf16 %v462, %v456
    %v601 = vpack.c.bf16 %v463, %v457
    %v602 = vpack.c.bf16 %v464, %v458
    %v603 = vpack.c.bf16 %v471, %v465
    %v604 = vpack.c.bf16 %v472, %v466
    %v605 = vpack.c.bf16 %v473, %v467
    %v606 = vpack.c.bf16 %v474, %v468
    %v607 = vpack.c.bf16 %v475, %v469
    %v608 = vpack.c.bf16 %v476, %v470
    %v609 = vpack.c.bf16 %v483, %v477
    %v610 = vpack.c.bf16 %v484, %v478
    %v611 = vpack.c.bf16 %v485, %v479
    %v612 = vpack.c.bf16 %v486, %v480
    %v613 = vpack.c.bf16 %v487, %v481
    %v614 = vpack.c.bf16 %v488, %v482
    %v615 = vpack.c.bf16 %v495, %v489
    %v616 = vpack.c.bf16 %v496, %v490
    %v617 = vpack.c.bf16 %v497, %v491
    %v618 = vpack.c.bf16 %v498, %v492
    %v619 = vpack.c.bf16 %v499, %v493
    %v620 = vpack.c.bf16 %v500, %v494
    %v621 = vpack.c.bf16 %v507, %v501
    %v622 = vpack.c.bf16 %v508, %v502
    %v623 = vpack.c.bf16 %v509, %v503
    %v624 = vpack.c.bf16 %v510, %v504
    %v625 = vpack.c.bf16 %v511, %v505
    %v626 = vpack.c.bf16 %v512, %v506
    %v627 = vpack.c.bf16 %v519, %v513
    %v628 = vpack.c.bf16 %v520, %v514
    %v629 = vpack.c.bf16 %v521, %v515
    %v630 = vpack.c.bf16 %v522, %v516
    %v631 = vpack.c.bf16 %v523, %v517
    %v632 = vpack.c.bf16 %v524, %v518
    %v633 = vpack.c.bf16 %v531, %v525
    %v634 = vpack.c.bf16 %v532, %v526
    %v635 = vpack.c.bf16 %v533, %v527
    %v636 = vpack.c.bf16 %v534, %v528
    %v637 = vpack.c.bf16 %v535, %v529
    %v638 = vpack.c.bf16 %v536, %v530
    %v639 = vpack.c.bf16 %v543, %v537
    %v640 = vpack.c.bf16 %v544, %v538
    %v641 = vpack.c.bf16 %v545, %v539
    %v642 = vpack.c.bf16 %v546, %v540
    %v643 = vpack.c.bf16 %v547, %v541
    %v644 = vpack.c.bf16 %v548, %v542
    %645 = vmatpush.bf16.msra.mxu0 %v591
    %646 = vmatpush.bf16.msra.mxu0 %v585
    %647 = vmatpush.bf16.msra.mxu0 %v579
    %648 = vmatpush.bf16.msra.mxu0 %v573
    %649 = vmatpush.bf16.msra.mxu0 %v567
    %650 = vmatpush.bf16.msra.mxu0 %v561
    %651 = vmatpush.bf16.msra.mxu0 %v555
    %652 = vmatpush.bf16.msra.mxu0 %v549
    %653 = vmatmul.bf16.gmra.mxu0 %v115
    %v654 = vpop.f32.mrf.mxu0
    %v655 = vadd.f32 0.0, %v654
    %v656 = vpop.f32.mrf.mxu0
    %v657 = vadd.f32 0.0, %v656
    %658 = vdwg.mxu0
    %659 = vmatpush.bf16.msra.mxu0 %v639
    %660 = vmatpush.bf16.msra.mxu0 %v633
    %661 = vmatpush.bf16.msra.mxu0 %v627
    %662 = vmatpush.bf16.msra.mxu0 %v621
    %663 = vmatpush.bf16.msra.mxu0 %v615
    %664 = vmatpush.bf16.msra.mxu0 %v609
    %665 = vmatpush.bf16.msra.mxu0 %v603
    %666 = vmatpush.bf16.msra.mxu0 %v597
    %667 = vmatmul.bf16.gmra.mxu0 %v116
    %v668 = vpop.f32.mrf.mxu0
    %v669 = vadd.f32 %v655, %v668
    %v670 = vpop.f32.mrf.mxu0
    %v671 = vadd.f32 %v657, %v670
    %672 = vdwg.mxu0
    %673 = vmatpush.bf16.msra.mxu0 %v592
    %674 = vmatpush.bf16.msra.mxu0 %v586
    %675 = vmatpush.bf16.msra.mxu0 %v580
    %676 = vmatpush.bf16.msra.mxu0 %v574
    %677 = vmatpush.bf16.msra.mxu0 %v568
    %678 = vmatpush.bf16.msra.mxu0 %v562
    %679 = vmatpush.bf16.msra.mxu0 %v556
    %680 = vmatpush.bf16.msra.mxu0 %v550
    %681 = vmatmul.bf16.gmra.mxu0 %v115
    %v682 = vpop.f32.mrf.mxu0
    %v683 = vadd.f32 0.0, %v682
    %v684 = vpop.f32.mrf.mxu0
    %v685 = vadd.f32 0.0, %v684
    %686 = vdwg.mxu0
    %687 = vmatpush.bf16.msra.mxu0 %v640
    %688 = vmatpush.bf16.msra.mxu0 %v634
    %689 = vmatpush.bf16.msra.mxu0 %v628
    %690 = vmatpush.bf16.msra.mxu0 %v622
    %691 = vmatpush.bf16.msra.mxu0 %v616
    %692 = vmatpush.bf16.msra.mxu0 %v610
    %693 = vmatpush.bf16.msra.mxu0 %v604
    %694 = vmatpush.bf16.msra.mxu0 %v598
    %695 = vmatmul.bf16.gmra.mxu0 %v116
    %v696 = vpop.f32.mrf.mxu0
    %v697 = vadd.f32 %v683, %v696
    %v698 = vpop.f32.mrf.mxu0
    %v699 = vadd.f32 %v685, %v698
    %700 = vdwg.mxu0
    %701 = vmatpush.bf16.msra.mxu0 %v593
    %702 = vmatpush.bf16.msra.mxu0 %v587
    %703 = vmatpush.bf16.msra.mxu0 %v581
    %704 = vmatpush.bf16.msra.mxu0 %v575
    %705 = vmatpush.bf16.msra.mxu0 %v569
    %706 = vmatpush.bf16.msra.mxu0 %v563
    %707 = vmatpush.bf16.msra.mxu0 %v557
    %708 = vmatpush.bf16.msra.mxu0 %v551
    %709 = vmatmul.bf16.gmra.mxu0 %v115
    %v710 = vpop.f32.mrf.mxu0
    %v711 = vadd.f32 0.0, %v710
    %v712 = vpop.f32.mrf.mxu0
    %v713 = vadd.f32 0.0, %v712
    %714 = vdwg.mxu0
    %715 = vmatpush.bf16.msra.mxu0 %v641
    %716 = vmatpush.bf16.msra.mxu0 %v635
    %717 = vmatpush.bf16.msra.mxu0 %v629
    %718 = vmatpush.bf16.msra.mxu0 %v623
    %719 = vmatpush.bf16.msra.mxu0 %v617
    %720 = vmatpush.bf16.msra.mxu0 %v611
    %721 = vmatpush.bf16.msra.mxu0 %v605
    %722 = vmatpush.bf16.msra.mxu0 %v599
    %723 = vmatmul.bf16.gmra.mxu0 %v116
    %v724 = vpop.f32.mrf.mxu0
    %v725 = vadd.f32 %v711, %v724
    %v726 = vpop.f32.mrf.mxu0
    %v727 = vadd.f32 %v713, %v726
    %728 = vdwg.mxu0
    %729 = vmatpush.bf16.msra.mxu0 %v594
    %730 = vmatpush.bf16.msra.mxu0 %v588
    %731 = vmatpush.bf16.msra.mxu0 %v582
    %732 = vmatpush.bf16.msra.mxu0 %v576
    %733 = vmatpush.bf16.msra.mxu0 %v570
    %734 = vmatpush.bf16.msra.mxu0 %v564
    %735 = vmatpush.bf16.msra.mxu0 %v558
    %736 = vmatpush.bf16.msra.mxu0 %v552
    %737 = vmatmul.bf16.gmra.mxu0 %v115
    %v738 = vpop.f32.mrf.mxu0
    %v739 = vadd.f32 0.0, %v738
    %v740 = vpop.f32.mrf.mxu0
    %v741 = vadd.f32 0.0, %v740
    %742 = vdwg.mxu0
    %743 = vmatpush.bf16.msra.mxu0 %v642
    %744 = vmatpush.bf16.msra.mxu0 %v636
    %745 = vmatpush.bf16.msra.mxu0 %v630
    %746 = vmatpush.bf16.msra.mxu0 %v624
    %747 = vmatpush.bf16.msra.mxu0 %v618
    %748 = vmatpush.bf16.msra.mxu0 %v612
    %749 = vmatpush.bf16.msra.mxu0 %v606
    %750 = vmatpush.bf16.msra.mxu0 %v600
    %751 = vmatmul.bf16.gmra.mxu0 %v116
    %v752 = vpop.f32.mrf.mxu0
    %v753 = vadd.f32 %v739, %v752
    %v754 = vpop.f32.mrf.mxu0
    %v755 = vadd.f32 %v741, %v754
    %756 = vdwg.mxu0
    %757 = vmatpush.bf16.msra.mxu0 %v595
    %758 = vmatpush.bf16.msra.mxu0 %v589
    %759 = vmatpush.bf16.msra.mxu0 %v583
    %760 = vmatpush.bf16.msra.mxu0 %v577
    %761 = vmatpush.bf16.msra.mxu0 %v571
    %762 = vmatpush.bf16.msra.mxu0 %v565
    %763 = vmatpush.bf16.msra.mxu0 %v559
    %764 = vmatpush.bf16.msra.mxu0 %v553
    %765 = vmatmul.bf16.gmra.mxu0 %v115
    %v766 = vpop.f32.mrf.mxu0
    %v767 = vadd.f32 0.0, %v766
    %v768 = vpop.f32.mrf.mxu0
    %v769 = vadd.f32 0.0, %v768
    %770 = vdwg.mxu0
    %771 = vmatpush.bf16.msra.mxu0 %v643
    %772 = vmatpush.bf16.msra.mxu0 %v637
    %773 = vmatpush.bf16.msra.mxu0 %v631
    %774 = vmatpush.bf16.msra.mxu0 %v625
    %775 = vmatpush.bf16.msra.mxu0 %v619
    %776 = vmatpush.bf16.msra.mxu0 %v613
    %777 = vmatpush.bf16.msra.mxu0 %v607
    %778 = vmatpush.bf16.msra.mxu0 %v601
    %779 = vmatmul.bf16.gmra.mxu0 %v116
    %v780 = vpop.f32.mrf.mxu0
    %v781 = vadd.f32 %v767, %v780
    %v782 = vpop.f32.mrf.mxu0
    %v783 = vadd.f32 %v769, %v782
    %784 = vdwg.mxu0
    %785 = vmatpush.bf16.msra.mxu0 %v596
    %786 = vmatpush.bf16.msra.mxu0 %v590
    %787 = vmatpush.bf16.msra.mxu0 %v584
    %788 = vmatpush.bf16.msra.mxu0 %v578
    %789 = vmatpush.bf16.msra.mxu0 %v572
    %790 = vmatpush.bf16.msra.mxu0 %v566
    %791 = vmatpush.bf16.msra.mxu0 %v560
    %792 = vmatpush.bf16.msra.mxu0 %v554
    %793 = vmatmul.bf16.gmra.mxu0 %v115
    %v794 = vpop.f32.mrf.mxu0
    %v795 = vadd.f32 0.0, %v794
    %v796 = vpop.f32.mrf.mxu0
    %v797 = vadd.f32 0.0, %v796
    %798 = vdwg.mxu0
    %799 = vmatpush.bf16.msra.mxu0 %v644
    %800 = vmatpush.bf16.msra.mxu0 %v638
    %801 = vmatpush.bf16.msra.mxu0 %v632
    %802 = vmatpush.bf16.msra.mxu0 %v626
    %803 = vmatpush.bf16.msra.mxu0 %v620
    %804 = vmatpush.bf16.msra.mxu0 %v614
    %805 = vmatpush.bf16.msra.mxu0 %v608
    %806 = vmatpush.bf16.msra.mxu0 %v602
    %807 = vmatmul.bf16.gmra.mxu0 %v116
    %v808 = vpop.f32.mrf.mxu0
    %v809 = vadd.f32 %v795, %v808
    %v810 = vpop.f32.mrf.mxu0
    %v811 = vadd.f32 %v797, %v810
    %812 = vdwg.mxu0
    %v813 = vadd.f32 %v93, %v669
    %v814 = vadd.f32 %v94, %v697
    %v815 = vadd.f32 %v95, %v725
    %v816 = vadd.f32 %v96, %v753
    %v817 = vadd.f32 %v97, %v781
    %v818 = vadd.f32 %v98, %v809
    %v819 = vadd.f32 %v99, %v671
    %v820 = vadd.f32 %v100, %v699
    %v821 = vadd.f32 %v101, %v727
    %v822 = vadd.f32 %v102, %v755
    %v823 = vadd.f32 %v103, %v783
    %v824 = vadd.f32 %v104, %v811
    %825 = vst [vmem:[#allocation2] sm:$0xff] %v813
    %826 = vst [vmem:[#allocation2 + $0x8] sm:$0xff] %v814
    %827 = vst [vmem:[#allocation2 + $0x10] sm:$0xff] %v815
    %828 = vst [vmem:[#allocation2 + $0x18] sm:$0xff] %v816
    %829 = vst [vmem:[#allocation2 + $0x20] sm:$0xff] %v817
    %830 = vst [vmem:[#allocation2 + $0x28] sm:$0xff] %v818
    %831 = vst [vmem:[#allocation2 + $0x30] sm:$0xff] %v819
    %832 = vst [vmem:[#allocation2 + $0x38] sm:$0xff] %v820
    %833 = vst [vmem:[#allocation2 + $0x40] sm:$0xff] %v821
    %834 = vst [vmem:[#allocation2 + $0x48] sm:$0xff] %v822
    %835 = vst [vmem:[#allocation2 + $0x50] sm:$0xff] %v823
    %836 = vst [vmem:[#allocation2 + $0x58] sm:$0xff] %v824
    // Predicated region
    $region38: #{tpu_custom_call.1} parent=1 // pred_check
      %p837 = pneg %p77
    $region39: #{tpu_custom_call.1} parent=1 // pred_check_branch
      %839 = sbr.rel (%p837) target = $region41
    $region40: #{tpu_custom_call.1} parent=1 // pred_region
      %v840 = vld [vmem:[#allocation8] sm:$0x3f]
      %v841 = vld [vmem:[#allocation2] sm:$0xff]
      %v842 = vld [vmem:[#allocation2 + $0x8] sm:$0xff]
      %v843 = vld [vmem:[#allocation2 + $0x10] sm:$0xff]
      %v844 = vld [vmem:[#allocation2 + $0x18] sm:$0xff]
      %v845 = vld [vmem:[#allocation2 + $0x20] sm:$0xff]
      %v846 = vld [vmem:[#allocation2 + $0x28] sm:$0xff]
      %v847 = vld [vmem:[#allocation2 + $0x30] sm:$0xff]
      %v848 = vld [vmem:[#allocation2 + $0x38] sm:$0xff]
      %v849 = vld [vmem:[#allocation2 + $0x40] sm:$0xff]
      %v850 = vld [vmem:[#allocation2 + $0x48] sm:$0xff]
      %v851 = vld [vmem:[#allocation2 + $0x50] sm:$0xff]
      %v852 = vld [vmem:[#allocation2 + $0x58] sm:$0xff]
      %v854 = vperm.slane %v840, 0
      %v855 = vperm.slane %v840, 1
      %v856 = vperm.slane %v840, 2
      %v857 = vperm.slane %v840, 3
      %v858 = vperm.slane %v840, 4
      %v859 = vperm.slane %v840, 5
      %v866 = vmul.f32 %v854, %v841
      %v867 = vmul.f32 %v855, %v842
      %v868 = vmul.f32 %v856, %v843
      %v869 = vmul.f32 %v857, %v844
      %v870 = vmul.f32 %v858, %v845
      %v871 = vmul.f32 %v859, %v846
      %v872 = vmul.f32 %v854, %v847
      %v873 = vmul.f32 %v855, %v848
      %v874 = vmul.f32 %v856, %v849
      %v875 = vmul.f32 %v857, %v850
      %v876 = vmul.f32 %v858, %v851
      %v877 = vmul.f32 %v859, %v852
      %v878 = vld [vmem:[#allocation9] sm:$0x3f]
      %v880 = vperm.slane %v878, 0
      %v881 = vperm.slane %v878, 1
      %v882 = vperm.slane %v878, 2
      %v883 = vperm.slane %v878, 3
      %v884 = vperm.slane %v878, 4
      %v885 = vperm.slane %v878, 5
      %v892 = vadd.f32 %v866, %v880
      %v893 = vadd.f32 %v867, %v881
      %v894 = vadd.f32 %v868, %v882
      %v895 = vadd.f32 %v869, %v883
      %v896 = vadd.f32 %v870, %v884
      %v897 = vadd.f32 %v871, %v885
      %v898 = vadd.f32 %v872, %v880
      %v899 = vadd.f32 %v873, %v881
      %v900 = vadd.f32 %v874, %v882
      %v901 = vadd.f32 %v875, %v883
      %v902 = vadd.f32 %v876, %v884
      %v903 = vadd.f32 %v877, %v885
      %v904 = vround.ne.pseudo %v892
      %v905 = vround.ne.pseudo %v893
      %v906 = vround.ne.pseudo %v894
      %v907 = vround.ne.pseudo %v895
      %v908 = vround.ne.pseudo %v896
      %v909 = vround.ne.pseudo %v897
      %v910 = vround.ne.pseudo %v898
      %v911 = vround.ne.pseudo %v899
      %v912 = vround.ne.pseudo %v900
      %v913 = vround.ne.pseudo %v901
      %v914 = vround.ne.pseudo %v902
      %v915 = vround.ne.pseudo %v903
      %v916 = vmax.f32 %v904, -128.0
      %v917 = vmax.f32 %v905, -128.0
      %v918 = vmax.f32 %v906, -128.0
      %v919 = vmax.f32 %v907, -128.0
      %v920 = vmax.f32 %v908, -128.0
      %v921 = vmax.f32 %v909, -128.0
      %v922 = vmax.f32 %v910, -128.0
      %v923 = vmax.f32 %v911, -128.0
      %v924 = vmax.f32 %v912, -128.0
      %v925 = vmax.f32 %v913, -128.0
      %v926 = vmax.f32 %v914, -128.0
      %v927 = vmax.f32 %v915, -128.0
      %v928 = vmin.f32 %v916, 127.0
      %v929 = vmin.f32 %v917, 127.0
      %v930 = vmin.f32 %v918, 127.0
      %v931 = vmin.f32 %v919, 127.0
      %v932 = vmin.f32 %v920, 127.0
      %v933 = vmin.f32 %v921, 127.0
      %v934 = vmin.f32 %v922, 127.0
      %v935 = vmin.f32 %v923, 127.0
      %v936 = vmin.f32 %v924, 127.0
      %v937 = vmin.f32 %v925, 127.0
      %v938 = vmin.f32 %v926, 127.0
      %v939 = vmin.f32 %v927, 127.0
      %v940 = vmax.f32 %v928, -128.0
      %v941 = vmax.f32 %v929, -128.0
      %v942 = vmax.f32 %v930, -128.0
      %v943 = vmax.f32 %v931, -128.0
      %v944 = vmax.f32 %v932, -128.0
      %v945 = vmax.f32 %v933, -128.0
      %v946 = vmax.f32 %v934, -128.0
      %v947 = vmax.f32 %v935, -128.0
      %v948 = vmax.f32 %v936, -128.0
      %v949 = vmax.f32 %v937, -128.0
      %v950 = vmax.f32 %v938, -128.0
      %v951 = vmax.f32 %v939, -128.0
      %v952 = vmin.f32 %v940, 127.0
      %v953 = vmin.f32 %v941, 127.0
      %v954 = vmin.f32 %v942, 127.0
      %v955 = vmin.f32 %v943, 127.0
      %v956 = vmin.f32 %v944, 127.0
      %v957 = vmin.f32 %v945, 127.0
      %v958 = vmin.f32 %v946, 127.0
      %v959 = vmin.f32 %v947, 127.0
      %v960 = vmin.f32 %v948, 127.0
      %v961 = vmin.f32 %v949, 127.0
      %v962 = vmin.f32 %v950, 127.0
      %v963 = vmin.f32 %v951, 127.0
      %v964 = vcvt.f32.s32.to.zero.pseudo %v952
      %v965 = vcvt.f32.s32.to.zero.pseudo %v953
      %v966 = vcvt.f32.s32.to.zero.pseudo %v954
      %v967 = vcvt.f32.s32.to.zero.pseudo %v955
      %v968 = vcvt.f32.s32.to.zero.pseudo %v956
      %v969 = vcvt.f32.s32.to.zero.pseudo %v957
      %v970 = vcvt.f32.s32.to.zero.pseudo %v958
      %v971 = vcvt.f32.s32.to.zero.pseudo %v959
      %v972 = vcvt.f32.s32.to.zero.pseudo %v960
      %v973 = vcvt.f32.s32.to.zero.pseudo %v961
      %v974 = vcvt.f32.s32.to.zero.pseudo %v962
      %v975 = vcvt.f32.s32.to.zero.pseudo %v963
      %v976 = vpack.c.b16 %v965, %v964
      %v977 = vpack.c.b16 %v967, %v966
      %v978 = vpack.c.b8 %v977, %v976
      %v979 = vpack.c.b16 %v969, %v968
      %v980 = vpack.c.b8 %v979, %v979
      %v981 = vpack.c.b16 %v971, %v970
      %v982 = vpack.c.b16 %v973, %v972
      %v983 = vpack.c.b8 %v982, %v981
      %v984 = vpack.c.b16 %v975, %v974
      %v985 = vpack.c.b8 %v984, %v984
      %986 = vst [vmem:[#allocation11] sm:$0xff] %v978
      %987 = vst [vmem:[#allocation11 + $0x8] sm:$0xf] %v980
      %988 = vst [vmem:[#allocation11 + $0xc] sm:$0xff] %v983
      %989 = vst [vmem:[#allocation11 + $0x14] sm:$0xf] %v985
    $region41: #{tpu_custom_call.1} parent=1 // pred_fallthru
      _
    // Predicated region
    $region42: #{tpu_custom_call.1} parent=1 // pred_check
      _
    $region43: #{tpu_custom_call.1} parent=1 // pred_check_branch
      %991 = sbr.rel (0) target = $region45
    $region44: #{tpu_custom_call.1} parent=1 // pred_region
      %993 = vsyncadd [#allocation5], 0
      %s994 = sshll.u32 [#allocation11], 4
      %s995 = int_to_ptr.vmem [resolvable:$true] %s994
      %s996 = sshll.u32 %s4, 4
      %s997 = int_to_ptr.hbm [resolvable:$true] %s996
      %1002 = dma.vmem_to_hbm [thread:$0]  %s995, 384, %s997, [#allocation5], 192, 192, 12
    $region45: #{tpu_custom_call.1} parent=1 // pred_fallthru
      _
    // Predicated region
    $region46: #{tpu_custom_call.1} parent=1 // pred_check
      _
    $region47: #{tpu_custom_call.1} parent=1 // pred_check_branch
      %1004 = sbr.rel (0) target = $region49
    $region48: #{tpu_custom_call.1} parent=1 // pred_region
      %1006 = dma.done [#allocation5], 384
    $region49: #{tpu_custom_call.1} parent=1 // pred_fallthru
      _
    %1007 = vsyncpa [#allocation4], 1
    %1008 = vsyncpa [#allocation7], 1
    %1009 = vsyncpa [#allocation10], 1
    %1010 = vsyncpa [#allocation5], 1

</llo_original>
